<compile_context>
chip_gen: v7x
topology: tpu7x:2x2x1
jax: 0.10.0
libtpu: 0.0.40
codegen_flags: <defaults>
</compile_context>

<pallas_src>
import numpy as np
import jax
import jax.numpy as jnp
from jax.experimental import pallas as pl
from jax.experimental.pallas import tpu as pltpu


# ---------------- interpolation matrices (built once at trace time) ----------------

def _bilinear_matrix(n_in, n_out):
    """1-D bilinear resize matrix, PyTorch align_corners=True semantics."""
    A = np.zeros((n_out, n_in), np.float32)
    if n_in == 1 or n_out == 1:
        A[:, 0] = 1.0
        return A
    scale = (n_in - 1) / (n_out - 1)
    for i in range(n_out):
        src = i * scale
        i0 = min(int(np.floor(src)), n_in - 1)
        i1 = min(i0 + 1, n_in - 1)
        f = src - i0
        A[i, i0] += 1.0 - f
        A[i, i1] += f
    return A


# ---------------- Pallas kernels ----------------

def _up_guide_sep_kernel(x_ref, ah_ref, awt_ref, w_ref, o_ref):
    # x_ref  : (NB, C, Hi, Wi)  VMEM   input batch block
    # ah_ref : (Ho, Hi)         VMEM   height-interp matrix
    # awt_ref: (Wi, Wo)         VMEM   width-interp matrix (transposed)
    # w_ref  : (C, C)           SMEM   1x1 conv weight (out_ch, in_ch), bias=False
    # o_ref  : (NB, C, Ho, Wo)  VMEM
    nb, c, hi, wi = x_ref.shape
    ah = ah_ref[...]
    awt = awt_ref[...]
    for co in range(c):
        # 1x1 conv (channel mix) BEFORE the upsample: FMAs on Hi*Wi, not Ho*Wo.
        m = x_ref[:, 0, :, :] * w_ref[co, 0]
        for ci in range(1, c):
            m = m + x_ref[:, ci, :, :] * w_ref[co, ci]             # (NB, Hi, Wi)

        # Width interpolation first: one MXU matmul with batch rows folded into M,
        # intermediate is lane-dense in Wo.
        t = jnp.dot(m.reshape(nb * hi, wi), awt,
                    preferred_element_type=jnp.float32)            # (NB*Hi, Wo)

        # Height interpolation per image; store immediately so only one (Ho, Wo)
        # output tile is live at a time.
        for b in range(nb):
            o_ref[b, co, :, :] = jnp.dot(
                ah, t[b * hi:(b + 1) * hi, :],
                preferred_element_type=jnp.float32).astype(o_ref.dtype)


def _up_guide_kron_kernel(x_ref, kt_ref, w_ref, o_ref):
    # Lane-dense path for small spatial sizes (Wo < 128 but Ho*Wo % 128 == 0):
    # the full 2-D bilinear upsample is one matmul on the flattened spatial dim.
    # x_ref : (NB, C, Hi*Wi)   VMEM
    # kt_ref: (Hi*Wi, Ho*Wo)   VMEM   kron(Ah, Aw)^T
    # w_ref : (C, C)           SMEM
    # o_ref : (NB, C, Ho*Wo)   VMEM   lane-dense output
    nb, c, li = x_ref.shape
    kt = kt_ref[...]
    for co in range(c):
        m = x_ref[:, 0, :] * w_ref[co, 0]
        for ci in range(1, c):
            m = m + x_ref[:, ci, :] * w_ref[co, ci]                # (NB, Li)
        o_ref[:, co, :] = jnp.dot(
            m, kt, preferred_element_type=jnp.float32).astype(o_ref.dtype)


# ---------------- wrapper ----------------

def _choose_batch_block(n, per_elem_bytes, budget_bytes=8 << 20):
    """Largest divisor of n within a VMEM budget, keeping >=2 grid steps (v7x 2 TCs)."""
    cap = max(1, budget_bytes // max(1, per_elem_bytes))
    if n >= 2:
        cap = min(cap, n // 2)
    nb = 1
    for d in range(1, n + 1):
        if n % d == 0 and d <= cap:
            nb = d
    return nb


def up_guide_forward(x_nchw, conv_w, *, scale=2):
    """Up_guide forward: bilinear x`scale` upsample (align_corners=True) + 1x1 conv."""
    n, c, h, w = x_nchw.shape
    co_, ci_, kh, kw = conv_w.shape
    assert co_ == c and ci_ == c
    assert kh == 1 and kw == 1, "only kernel_size=1 (module default) is implemented"

    ho, wo = h * scale, w * scale
    ah = _bilinear_matrix(h, ho)                          # (Ho, Hi)
    aw = _bilinear_matrix(w, wo)                          # (Wo, Wi)
    wmix = conv_w.reshape(c, c).astype(jnp.float32)       # (Cout, Cin) scalars in SMEM

    # double-buffered in + out + f32 intermediate, per batch element
    per_elem_bytes = 4 * c * (2 * h * w + 2 * ho * wo + h * wo)
    nb = _choose_batch_block(n, per_elem_bytes)
    grid = (n // nb,)

    # Lane-dense "kron" path when Wo would give masked stores.
    li, lo = h * w, ho * wo
    use_kron = (wo % 128 != 0) and (lo % 128 == 0) and (li * lo * 4 <= (4 << 20))

    block_bytes = nb * per_elem_bytes + 4 * (li * lo if use_kron else (ho * h + w * wo))
    vmem_limit = int(min(48 << 20, max(16 << 20, 4 * block_bytes)))
    cparams = pltpu.CompilerParams(dimension_semantics=("parallel",),
                                   vmem_limit_bytes=vmem_limit)

    if use_kron:
        kt = jnp.asarray(np.kron(ah, aw).T)               # (Hi*Wi, Ho*Wo)
        x_flat = x_nchw.reshape(n, c, li)
        out_flat = pl.pallas_call(
            _up_guide_kron_kernel,
            out_shape=jax.ShapeDtypeStruct((n, c, lo), x_nchw.dtype),
            grid=grid,
            in_specs=[
                pl.BlockSpec((nb, c, li), lambda i: (i, 0, 0)),
                pl.BlockSpec((li, lo), lambda i: (0, 0)),
                pl.BlockSpec(memory_space=pltpu.MemorySpace.SMEM),
            ],
            out_specs=pl.BlockSpec((nb, c, lo), lambda i: (i, 0, 0)),
            compiler_params=cparams,
        )(x_flat, kt, wmix)
        return out_flat.reshape(n, c, ho, wo)

    # TODO(synk): for very large feature maps (H >~ 256) add an Ho-tile grid axis so
    #             double-buffered blocks stay well under v7x's 64 MiB VMEM.
    return pl.pallas_call(
        _up_guide_sep_kernel,
        out_shape=jax.ShapeDtypeStruct((n, c, ho, wo), x_nchw.dtype),
        grid=grid,
        in_specs=[
            pl.BlockSpec((nb, c, h, w), lambda i: (i, 0, 0, 0)),
            pl.BlockSpec((ho, h), lambda i: (0, 0)),
            pl.BlockSpec((w, wo), lambda i: (0, 0)),
            pl.BlockSpec(memory_space=pltpu.MemorySpace.SMEM),
        ],
        out_specs=pl.BlockSpec((nb, c, ho, wo), lambda i: (i, 0, 0, 0)),
        compiler_params=cparams,
    )(x_nchw, jnp.asarray(ah), jnp.asarray(aw.T), wmix)


# ---------------- pure-JAX reference (gather + lerp, mirrors PyTorch) ----------------

def up_guide_ref(x, conv_w, *, scale=2):
    n, c, h, w = x.shape
    ho, wo = h * scale, w * scale
    hs = jnp.arange(ho, dtype=jnp.float32) * ((h - 1) / (ho - 1) if ho > 1 else 0.0)
    ws = jnp.arange(wo, dtype=jnp.float32) * ((w - 1) / (wo - 1) if wo > 1 else 0.0)
    h0 = jnp.floor(hs).astype(jnp.int32)
    h1 = jnp.minimum(h0 + 1, h - 1)
    fh = hs - h0.astype(jnp.float32)
    w0 = jnp.floor(ws).astype(jnp.int32)
    w1 = jnp.minimum(w0 + 1, w - 1)
    fw = ws - w0.astype(jnp.float32)
    xh = (x[:, :, h0, :] * (1.0 - fh)[None, None, :, None]
          + x[:, :, h1, :] * fh[None, None, :, None])                        # (N,C,Ho,W)
    y = (xh[:, :, :, w0] * (1.0 - fw)[None, None, None, :]
         + xh[:, :, :, w1] * fw[None, None, None, :])                        # (N,C,Ho,Wo)
    wm = conv_w.reshape(c, c)
    return jnp.einsum('oc,nchw->nohw', wm, y)


# ---------------- main ----------------

if __name__ == "__main__":
    key = jax.random.PRNGKey(0)
    kw_key, kx_key = jax.random.split(key)

    ch = 3
    bound = 1.0 / np.sqrt(ch * 1 * 1)   # Conv2d default init bound, fan_in = ch*k*k
    conv_w = jax.random.uniform(kw_key, (ch, ch, 1, 1), jnp.float32, -bound, bound)

    # (4, 16, 16): small-spatial -> lane-dense kron path, NB=2 batch blocking.
    # (2, 64, 64): Wo=128 lane-dense separable path, grid of 2 parallel steps.
    for (N, H, W) in [(4, 16, 16), (2, 64, 64)]:
        kx = jax.random.fold_in(kx_key, H)
        x = jax.random.normal(kx, (N, ch, H, W), jnp.float32)

        out = jax.block_until_ready(up_guide_forward(x, conv_w))

        ref = up_guide_ref(x, conv_w)
        np.testing.assert_allclose(np.asarray(out), np.asarray(ref),
                                   atol=1e-4, rtol=1e-4)

    print("KERNEL_OK")
</pallas_src>

<mosaic_0001>
module attributes {stable_mosaic.version = 11 : i64} {
  func.func @_up_guide_kron_kernel(%arg0: i32, %arg1: memref<2x3x256xf32, #tpu.memory_space<vmem>>, %arg2: memref<256x1024xf32, #tpu.memory_space<vmem>>, %arg3: memref<3x3xf32, #tpu.memory_space<smem>>, %arg4: memref<2x3x1024xf32, #tpu.memory_space<vmem>>) attributes {dimension_semantics = [#tpu.dimension_semantics<parallel>], iteration_bounds = array<i64: 2>, scalar_prefetch = 0 : i64, scratch_operands = 0 : i64, tpu.core_type = #tpu.core_type<tc>, window_params = [{transform_indices = @transform_0, window_bounds = array<i64: 2, 3, 256>}, {pipeline_mode = #tpu.pipeline_mode<synchronous>, transform_indices = @transform_1, window_bounds = array<i64: 256, 1024>}, {transform_indices = @transform_2, window_bounds = array<i64: 3, 3>}, {transform_indices = @transform_3, window_bounds = array<i64: 2, 3, 1024>}]} {
    %c0 = arith.constant 0 : index
    %c0_0 = arith.constant 0 : index
    %0 = vector.load %arg2[%c0, %c0_0] : memref<256x1024xf32, #tpu.memory_space<vmem>>, vector<256x1024xf32>
    %c0_1 = arith.constant 0 : index
    %c0_2 = arith.constant 0 : index
    %c0_3 = arith.constant 0 : index
    %1 = vector.load %arg1[%c0_1, %c0_2, %c0_3] : memref<2x3x256xf32, #tpu.memory_space<vmem>>, vector<2x1x256xf32>
    %2 = vector.shape_cast %1 : vector<2x1x256xf32> to vector<2x256xf32>
    %c0_4 = arith.constant 0 : index
    %c0_5 = arith.constant 0 : index
    %3 = memref.load %arg3[%c0_4, %c0_5] : memref<3x3xf32, #tpu.memory_space<smem>>
    %4 = vector.broadcast %3 : f32 to vector<2x256xf32>
    %5 = arith.mulf %2, %4 : vector<2x256xf32>
    %c0_6 = arith.constant 0 : index
    %c1 = arith.constant 1 : index
    %c0_7 = arith.constant 0 : index
    %6 = vector.load %arg1[%c0_6, %c1, %c0_7] : memref<2x3x256xf32, #tpu.memory_space<vmem>>, vector<2x1x256xf32>
    %7 = vector.shape_cast %6 : vector<2x1x256xf32> to vector<2x256xf32>
    %c0_8 = arith.constant 0 : index
    %c1_9 = arith.constant 1 : index
    %8 = memref.load %arg3[%c0_8, %c1_9] : memref<3x3xf32, #tpu.memory_space<smem>>
    %9 = vector.broadcast %8 : f32 to vector<2x256xf32>
    %10 = arith.mulf %7, %9 : vector<2x256xf32>
    %11 = arith.addf %5, %10 : vector<2x256xf32>
    %c0_10 = arith.constant 0 : index
    %c2 = arith.constant 2 : index
    %c0_11 = arith.constant 0 : index
    %12 = vector.load %arg1[%c0_10, %c2, %c0_11] : memref<2x3x256xf32, #tpu.memory_space<vmem>>, vector<2x1x256xf32>
    %13 = vector.shape_cast %12 : vector<2x1x256xf32> to vector<2x256xf32>
    %c0_12 = arith.constant 0 : index
    %c2_13 = arith.constant 2 : index
    %14 = memref.load %arg3[%c0_12, %c2_13] : memref<3x3xf32, #tpu.memory_space<smem>>
    %15 = vector.broadcast %14 : f32 to vector<2x256xf32>
    %16 = arith.mulf %13, %15 : vector<2x256xf32>
    %17 = arith.addf %11, %16 : vector<2x256xf32>
    %cst = arith.constant dense<0.000000e+00> : vector<2x1024xf32>
    %18 = tpu.matmul %17, %0, %cst {dimension_numbers = #tpu.dot_dimension_numbers<[1], [0], [0], [1], [0, 0, 1, 1], [], []>} : vector<2x256xf32>, vector<256x1024xf32>, vector<2x1024xf32> -> vector<2x1024xf32>
    %c0_14 = arith.constant 0 : index
    %c0_15 = arith.constant 0 : index
    %c0_16 = arith.constant 0 : index
    %19 = vector.load %arg4[%c0_14, %c0_15, %c0_16] : memref<2x3x1024xf32, #tpu.memory_space<vmem>>, vector<2x1x1024xf32>
    %20 = vector.shape_cast %19 : vector<2x1x1024xf32> to vector<2x1024xf32>
    %21 = vector.shape_cast %18 : vector<2x1024xf32> to vector<2x1x1024xf32>
    tpu.vector_store %arg4[%c0_14, %c0_15, %c0_16], %21 {strides = array<i32>} : memref<2x3x1024xf32, #tpu.memory_space<vmem>>, vector<2x1x1024xf32>,
    %c0_17 = arith.constant 0 : index
    %c0_18 = arith.constant 0 : index
    %c0_19 = arith.constant 0 : index
    %22 = vector.load %arg1[%c0_17, %c0_18, %c0_19] : memref<2x3x256xf32, #tpu.memory_space<vmem>>, vector<2x1x256xf32>
    %23 = vector.shape_cast %22 : vector<2x1x256xf32> to vector<2x256xf32>
    %c1_20 = arith.constant 1 : index
    %c0_21 = arith.constant 0 : index
    %24 = memref.load %arg3[%c1_20, %c0_21] : memref<3x3xf32, #tpu.memory_space<smem>>
    %25 = vector.broadcast %24 : f32 to vector<2x256xf32>
    %26 = arith.mulf %23, %25 : vector<2x256xf32>
    %c0_22 = arith.constant 0 : index
    %c1_23 = arith.constant 1 : index
    %c0_24 = arith.constant 0 : index
    %27 = vector.load %arg1[%c0_22, %c1_23, %c0_24] : memref<2x3x256xf32, #tpu.memory_space<vmem>>, vector<2x1x256xf32>
    %28 = vector.shape_cast %27 : vector<2x1x256xf32> to vector<2x256xf32>
    %c1_25 = arith.constant 1 : index
    %c1_26 = arith.constant 1 : index
    %29 = memref.load %arg3[%c1_25, %c1_26] : memref<3x3xf32, #tpu.memory_space<smem>>
    %30 = vector.broadcast %29 : f32 to vector<2x256xf32>
    %31 = arith.mulf %28, %30 : vector<2x256xf32>
    %32 = arith.addf %26, %31 : vector<2x256xf32>
    %c0_27 = arith.constant 0 : index
    %c2_28 = arith.constant 2 : index
    %c0_29 = arith.constant 0 : index
    %33 = vector.load %arg1[%c0_27, %c2_28, %c0_29] : memref<2x3x256xf32, #tpu.memory_space<vmem>>, vector<2x1x256xf32>
    %34 = vector.shape_cast %33 : vector<2x1x256xf32> to vector<2x256xf32>
    %c1_30 = arith.constant 1 : index
    %c2_31 = arith.constant 2 : index
    %35 = memref.load %arg3[%c1_30, %c2_31] : memref<3x3xf32, #tpu.memory_space<smem>>
    %36 = vector.broadcast %35 : f32 to vector<2x256xf32>
    %37 = arith.mulf %34, %36 : vector<2x256xf32>
    %38 = arith.addf %32, %37 : vector<2x256xf32>
    %cst_32 = arith.constant dense<0.000000e+00> : vector<2x1024xf32>
    %39 = tpu.matmul %38, %0, %cst_32 {dimension_numbers = #tpu.dot_dimension_numbers<[1], [0], [0], [1], [0, 0, 1, 1], [], []>} : vector<2x256xf32>, vector<256x1024xf32>, vector<2x1024xf32> -> vector<2x1024xf32>
    %c0_33 = arith.constant 0 : index
    %c1_34 = arith.constant 1 : index
    %c0_35 = arith.constant 0 : index
    %40 = vector.load %arg4[%c0_33, %c1_34, %c0_35] : memref<2x3x1024xf32, #tpu.memory_space<vmem>>, vector<2x1x1024xf32>
    %41 = vector.shape_cast %40 : vector<2x1x1024xf32> to vector<2x1024xf32>
    %42 = vector.shape_cast %39 : vector<2x1024xf32> to vector<2x1x1024xf32>
    tpu.vector_store %arg4[%c0_33, %c1_34, %c0_35], %42 {strides = array<i32>} : memref<2x3x1024xf32, #tpu.memory_space<vmem>>, vector<2x1x1024xf32>,
    %c0_36 = arith.constant 0 : index
    %c0_37 = arith.constant 0 : index
    %c0_38 = arith.constant 0 : index
    %43 = vector.load %arg1[%c0_36, %c0_37, %c0_38] : memref<2x3x256xf32, #tpu.memory_space<vmem>>, vector<2x1x256xf32>
    %44 = vector.shape_cast %43 : vector<2x1x256xf32> to vector<2x256xf32>
    %c2_39 = arith.constant 2 : index
    %c0_40 = arith.constant 0 : index
    %45 = memref.load %arg3[%c2_39, %c0_40] : memref<3x3xf32, #tpu.memory_space<smem>>
    %46 = vector.broadcast %45 : f32 to vector<2x256xf32>
    %47 = arith.mulf %44, %46 : vector<2x256xf32>
    %c0_41 = arith.constant 0 : index
    %c1_42 = arith.constant 1 : index
    %c0_43 = arith.constant 0 : index
    %48 = vector.load %arg1[%c0_41, %c1_42, %c0_43] : memref<2x3x256xf32, #tpu.memory_space<vmem>>, vector<2x1x256xf32>
    %49 = vector.shape_cast %48 : vector<2x1x256xf32> to vector<2x256xf32>
    %c2_44 = arith.constant 2 : index
    %c1_45 = arith.constant 1 : index
    %50 = memref.load %arg3[%c2_44, %c1_45] : memref<3x3xf32, #tpu.memory_space<smem>>
    %51 = vector.broadcast %50 : f32 to vector<2x256xf32>
    %52 = arith.mulf %49, %51 : vector<2x256xf32>
    %53 = arith.addf %47, %52 : vector<2x256xf32>
    %c0_46 = arith.constant 0 : index
    %c2_47 = arith.constant 2 : index
    %c0_48 = arith.constant 0 : index
    %54 = vector.load %arg1[%c0_46, %c2_47, %c0_48] : memref<2x3x256xf32, #tpu.memory_space<vmem>>, vector<2x1x256xf32>
    %55 = vector.shape_cast %54 : vector<2x1x256xf32> to vector<2x256xf32>
    %c2_49 = arith.constant 2 : index
    %c2_50 = arith.constant 2 : index
    %56 = memref.load %arg3[%c2_49, %c2_50] : memref<3x3xf32, #tpu.memory_space<smem>>
    %57 = vector.broadcast %56 : f32 to vector<2x256xf32>
    %58 = arith.mulf %55, %57 : vector<2x256xf32>
    %59 = arith.addf %53, %58 : vector<2x256xf32>
    %cst_51 = arith.constant dense<0.000000e+00> : vector<2x1024xf32>
    %60 = tpu.matmul %59, %0, %cst_51 {dimension_numbers = #tpu.dot_dimension_numbers<[1], [0], [0], [1], [0, 0, 1, 1], [], []>} : vector<2x256xf32>, vector<256x1024xf32>, vector<2x1024xf32> -> vector<2x1024xf32>
    %c0_52 = arith.constant 0 : index
    %c2_53 = arith.constant 2 : index
    %c0_54 = arith.constant 0 : index
    %61 = vector.load %arg4[%c0_52, %c2_53, %c0_54] : memref<2x3x1024xf32, #tpu.memory_space<vmem>>, vector<2x1x1024xf32>
    %62 = vector.shape_cast %61 : vector<2x1x1024xf32> to vector<2x1024xf32>
    %63 = vector.shape_cast %60 : vector<2x1024xf32> to vector<2x1x1024xf32>
    tpu.vector_store %arg4[%c0_52, %c2_53, %c0_54], %63 {strides = array<i32>} : memref<2x3x1024xf32, #tpu.memory_space<vmem>>, vector<2x1x1024xf32>,
    return
  }
  func.func @transform_0(%arg0: i32) -> (i32, i32, i32) {
    %c0_i32 = arith.constant 0 : i32
    %c0_i32_0 = arith.constant 0 : i32
    %c0_i32_1 = arith.constant 0 : i32
    return %arg0, %c0_i32, %c0_i32_0 : i32, i32, i32
  }
  func.func @transform_1(%arg0: i32) -> (i32, i32) {
    %c0_i32 = arith.constant 0 : i32
    %c0_i32_0 = arith.constant 0 : i32
    %c0_i32_1 = arith.constant 0 : i32
    return %c0_i32, %c0_i32_0 : i32, i32
  }
  func.func @transform_2(%arg0: i32) -> (i32, i32) {
    %c0_i32 = arith.constant 0 : i32
    %c0_i32_0 = arith.constant 0 : i32
    %c0_i32_1 = arith.constant 0 : i32
    return %c0_i32, %c0_i32_0 : i32, i32
  }
  func.func @transform_3(%arg0: i32) -> (i32, i32, i32) {
    %c0_i32 = arith.constant 0 : i32
    %c0_i32_0 = arith.constant 0 : i32
    %c0_i32_1 = arith.constant 0 : i32
    return %arg0, %c0_i32, %c0_i32_0 : i32, i32, i32
  }
}

</mosaic_0001>

<llo_original>
// kernel: tpu_custom_call.1
$region0: #{tpu_custom_call.1}
  #allocation0 [shape = 'u32[]', space=smem, size = 0x4, offset = 0x4, fixed_abs, tag = 'smem constant byte address 0x4 - core index']
  #allocation1 [shape = 'u32[144,128]{1,0:T(1,128)}', space=vmem, size = 0x12000, scoped, tag = 'internal scratch']
  %s0 = inlined_call_operand.vmem [shape: f32[4,3,256], index: 0, kind: input, shape index: {}]
  %s1 = inlined_call_operand.hbm [shape: f32[256,1024], index: 1, kind: input, shape index: {}]
  %s2 = inlined_call_operand.vmem [shape: f32[3,3], index: 2, kind: input, shape index: {}]
  %s3 = inlined_call_operand.vmem [shape: f32[4,3,1024], index: 3, kind: output, shape index: {}]
  %s4 = sld [smem:[#allocation0]]
  $region53: #{tpu_custom_call.1} parent=0
    _
  %s6 = ssub.s32 1, %s4
  %s7 = scalar_select 0, %s6, %s4
  $region1: #{tpu_custom_call.1} parent=0
    #allocation2 [shape = 'u8[1048576]{0}', space=vmem, size = 0x100000, scoped, tag = 'input window, operand 1, single buffered']
    #allocation3 [shape = 's32[2]{0}', space=sflag, size = 0x8, scoped, tag = 'scoped memory for tpu_custom_call.1']
    #allocation4 [shape = 's32[2]{0}', space=sflag, size = 0x8, scoped, tag = 'scoped memory for tpu_custom_call.1']
    #allocation5 [shape = 'u8[2048]{0}', space=smem, size = 0x800, scoped, tag = 'input window, operand 2, single buffered']
    %8 = vsyncpa [#allocation3], 0
    %9 = vsyncpa [#allocation4], 0
    loop: start=0, step=1, limit=4
    $region2: #{tpu_custom_call.1} parent=1 // loop_pre_header
      _
    $region3: #{tpu_custom_call.1} parent=1 // loop_header
      %s11 = sphi 0, %s15
      %p12 = scmp.ge.s32.totalorder %s11, 4
      %s21 = sphi 0, %s23
      %s24 = sphi 0, %s21
      %s25 = sphi 0, %s24
      %s41 = sphi 0, %s25
      %s45 = sphi 0, %s45
      %s47 = sphi 0, %s45
      %s48 = sphi 0, %s47
      %s62 = sphi 0, %s48
      %s66 = sphi 0, %s66
      %s68 = sphi 0, %s66
      %s69 = sphi 0, %s68
      %s83 = sphi 0, %s69
      %s89 = sphi 0, %s91
      %s92 = sphi 0, %s89
      %s93 = sphi 0, %s92
      %s109 = sphi 0, %s93
    $region4: #{tpu_custom_call.1} parent=1 // loop_header_branch
      %14 = sbr.rel (%p12) target = $region8
    $region5: #{tpu_custom_call.1} parent=1 // loop_body
      %s16 = ssub.s32 %s11, 1
      %s17 = ssub.s32 %s11, 2
      %s18 = sadd.s32 %s11, 1
      %s19 = ssub.s32 %s11, %s18
      %p20 = scmp.eq.s32.totalorder %s19, 0
      %s22 = sadd.s32 %s21, 1
      %s23 = scalar_select %p20, %s21, %s22
      %p26 = pneg %p20
      %p27 = scmp.eq.s32.totalorder %s11, 1
      %p28 = por %p26, %p27
      %p29 = scmp.ne.s32.totalorder %s21, %s24
      %p30 = scmp.eq.s32.totalorder %s11, 0
      %p31 = por %p29, %p30
      %p32 = scmp.ne.s32.totalorder %s21, %s24
      %p33 = scmp.eq.s32.totalorder %s16, 1
      %p34 = por %p32, %p33
      %p35 = scmp.ne.s32.totalorder %s24, %s25
      %p36 = scmp.eq.s32.totalorder %s16, 0
      %p37 = por %p35, %p36
      %p38 = scmp.ne.s32.totalorder %s24, %s25
      %p39 = scmp.eq.s32.totalorder %s17, 1
      %p40 = por %p38, %p39
      %p42 = scmp.ne.s32.totalorder %s25, %s41
      %p43 = scmp.eq.s32.totalorder %s17, 0
      %p44 = por %p42, %p43
      %s46 = sadd.s32 %s45, 1
      %p49 = scmp.eq.s32.totalorder %s11, 1
      %p50 = scmp.ne.s32.totalorder %s45, %s47
      %p51 = scmp.eq.s32.totalorder %s11, 0
      %p52 = por %p50, %p51
      %p53 = scmp.ne.s32.totalorder %s45, %s47
      %p54 = scmp.eq.s32.totalorder %s16, 1
      %p55 = por %p53, %p54
      %p56 = scmp.ne.s32.totalorder %s47, %s48
      %p57 = scmp.eq.s32.totalorder %s16, 0
      %p58 = por %p56, %p57
      %p59 = scmp.ne.s32.totalorder %s47, %s48
      %p60 = scmp.eq.s32.totalorder %s17, 1
      %p61 = por %p59, %p60
      %p63 = scmp.ne.s32.totalorder %s48, %s62
      %p64 = scmp.eq.s32.totalorder %s17, 0
      %p65 = por %p63, %p64
      %s67 = sadd.s32 %s66, 1
      %p70 = scmp.eq.s32.totalorder %s11, 1
      %p71 = scmp.ne.s32.totalorder %s66, %s68
      %p72 = scmp.eq.s32.totalorder %s11, 0
      %p73 = por %p71, %p72
      %p74 = scmp.ne.s32.totalorder %s66, %s68
      %p75 = scmp.eq.s32.totalorder %s16, 1
      %p76 = por %p74, %p75
      %p77 = scmp.ne.s32.totalorder %s68, %s69
      %p78 = scmp.eq.s32.totalorder %s16, 0
      %p79 = por %p77, %p78
      %p80 = scmp.ne.s32.totalorder %s68, %s69
      %p81 = scmp.eq.s32.totalorder %s17, 1
      %p82 = por %p80, %p81
      %p84 = scmp.ne.s32.totalorder %s69, %s83
      %p85 = scmp.eq.s32.totalorder %s17, 0
      %p86 = por %p84, %p85
      %s87 = ssub.s32 %s11, %s18
      %p88 = scmp.eq.s32.totalorder %s87, 0
      %s90 = sadd.s32 %s89, 1
      %s91 = scalar_select %p88, %s89, %s90
      %p94 = pneg %p88
      %p95 = scmp.eq.s32.totalorder %s11, 1
      %p96 = por %p94, %p95
      %p97 = scmp.ne.s32.totalorder %s89, %s92
      %p98 = scmp.eq.s32.totalorder %s11, 0
      %p99 = por %p97, %p98
      %p100 = scmp.ne.s32.totalorder %s89, %s92
      %p101 = scmp.eq.s32.totalorder %s16, 1
      %p102 = por %p100, %p101
      %p103 = scmp.ne.s32.totalorder %s92, %s93
      %p104 = scmp.eq.s32.totalorder %s16, 0
      %p105 = por %p103, %p104
      %p106 = scmp.ne.s32.totalorder %s92, %s93
      %p107 = scmp.eq.s32.totalorder %s17, 1
      %p108 = por %p106, %p107
      %p110 = scmp.ne.s32.totalorder %s93, %s109
      %p111 = scmp.eq.s32.totalorder %s17, 0
      %p112 = por %p110, %p111
      %p113 = scmp.le.s32.totalorder 1, %s11
      %p114 = scmp.lt.s32.totalorder %s11, 3
      %p115 = pnand %p113, %p114
      %p116 = pneg %p115
      // Predicated region
      $region9: #{tpu_custom_call.1} parent=5 // pred_check
        _
      $region10: #{tpu_custom_call.1} parent=5 // pred_check_branch
        %118 = sbr.rel (%p115) target = $region12
      $region11: #{tpu_custom_call.1} parent=5 // pred_region
        %s119 = ssub.s32 %s11, 1
        // Predicated region
        $region13: #{tpu_custom_call.1} parent=11 // pred_check
          %p120 = pneg %p58
        $region14: #{tpu_custom_call.1} parent=11 // pred_check_branch
          %122 = sbr.rel (%p120) target = $region16
        $region15: #{tpu_custom_call.1} parent=11 // pred_region
          %s124 = ssub.s32 32768, 32768
          %125 = vsyncadd [#allocation3], %s124
          %s126 = sshll.u32 [#allocation2], 4
          %s127 = int_to_ptr.vmem [resolvable:$true] %s126
          %132 = dma.hbm_to_vmem [thread:$0]  %s1, 32768, %s127, [#allocation3], 1024, 1024, 64
        $region16: #{tpu_custom_call.1} parent=11 // pred_fallthru
          _
        // Predicated region
        $region17: #{tpu_custom_call.1} parent=11 // pred_check
          %p133 = pneg %p79
        $region18: #{tpu_custom_call.1} parent=11 // pred_check_branch
          %135 = sbr.rel (%p133) target = $region20
        $region19: #{tpu_custom_call.1} parent=11 // pred_region
          %s137 = ssub.s32 64, 64
          %138 = vsyncadd [#allocation4], %s137
          %s140 = sshll.u32 %s2, 4
          %s141 = int_to_ptr.vmem [resolvable:$true] %s140
          %143 = dma.vmem_to_smem %s141, 64, [#allocation5], [#allocation4]
        $region20: #{tpu_custom_call.1} parent=11 // pred_fallthru
          _
      $region12: #{tpu_custom_call.1} parent=5 // pred_fallthru
        _
      %p144 = scmp.lt.s32.totalorder %s11, 2
      // Predicated region
      $region21: #{tpu_custom_call.1} parent=5 // pred_check
        %p145 = pneg %p144
      $region22: #{tpu_custom_call.1} parent=5 // pred_check_branch
        %147 = sbr.rel (%p145) target = $region24
      $region23: #{tpu_custom_call.1} parent=5 // pred_region
        // Predicated region
        $region25: #{tpu_custom_call.1} parent=23 // pred_check
          %p148 = pneg %p31
        $region26: #{tpu_custom_call.1} parent=23 // pred_check_branch
          %150 = sbr.rel (%p148) target = $region28
        $region27: #{tpu_custom_call.1} parent=23 // pred_region
          %s151 = smul.u32 2, %s11
          %p152 = scmp.lt.s32.totalorder %s151, 3
          %s153 = scalar_select %p152, %s151, 3
          %s154 = smul.addr %s153, 2
          %s155 = smul.addr %s154, 4
          %s156 = scalar_lea.vmem %s0, %s155
          %s157 = smul.u32 2, %s11
        $region28: #{tpu_custom_call.1} parent=23 // pred_fallthru
          _
      $region24: #{tpu_custom_call.1} parent=5 // pred_fallthru
        _
      %p158 = scmp.le.s32.totalorder 1, %s11
      %p159 = scmp.lt.s32.totalorder %s11, 3
      %p160 = pnand %p158, %p159
      %p161 = pneg %p160
      // Predicated region
      $region29: #{tpu_custom_call.1} parent=5 // pred_check
        _
      $region30: #{tpu_custom_call.1} parent=5 // pred_check_branch
        %163 = sbr.rel (%p160) target = $region32
      $region31: #{tpu_custom_call.1} parent=5 // pred_region
        %s164 = ssub.s32 %s11, 1
        // Predicated region
        $region33: #{tpu_custom_call.1} parent=31 // pred_check
          %p165 = pneg %p58
        $region34: #{tpu_custom_call.1} parent=31 // pred_check_branch
          %167 = sbr.rel (%p165) target = $region36
        $region35: #{tpu_custom_call.1} parent=31 // pred_region
          %168 = dma.done [#allocation3], 32768
        $region36: #{tpu_custom_call.1} parent=31 // pred_fallthru
          _
        // Predicated region
        $region37: #{tpu_custom_call.1} parent=31 // pred_check
          %p169 = pneg %p79
        $region38: #{tpu_custom_call.1} parent=31 // pred_check_branch
          %171 = sbr.rel (%p169) target = $region40
        $region39: #{tpu_custom_call.1} parent=31 // pred_region
          %172 = dma.done [#allocation4], 64
        $region40: #{tpu_custom_call.1} parent=31 // pred_fallthru
          _
        %173 = sfence
        %s174 = smul.u32 2, %s16
        %p175 = scmp.lt.s32.totalorder %s174, 3
        %s176 = scalar_select %p175, %s174, 3
        %s177 = smul.addr %s176, 2
        %s178 = smul.addr %s177, 4
        %s179 = scalar_lea.vmem %s0, %s178
        %p180 = pneg %p37
        %p181 = pneg %p34
        %p182 = pneg %p58
        %p183 = pneg %p55
        %p184 = pneg %p79
        %p185 = pneg %p76
        %p186 = pneg %p105
        %p187 = pneg %p102
        %s188 = smul.u32 2, %s16
        %p189 = scmp.lt.s32.totalorder %s188, 3
        %s190 = scalar_select %p189, %s188, 3
        %s191 = smul.addr %s190, 8
        %s192 = smul.addr %s191, 4
        %s193 = scalar_lea.vmem %s3, %s192
        %s194 = smul.u32 2, %s16
        %p195 = scmp.lt.s32.totalorder %s194, 3
        %s196 = scalar_select %p195, %s194, 3
        %s197 = smul.addr %s196, 2
        %s198 = smul.addr %s197, 4
        %s199 = scalar_lea.vmem %s0, %s198
        %s200 = smul.u32 2, %s16
        %s201 = smul.u32 2, %s16
        %p202 = scmp.lt.s32.totalorder %s201, 3
        %s203 = scalar_select %p202, %s201, 3
        %s204 = smul.addr %s203, 8
        %s205 = smul.addr %s204, 4
        %s206 = scalar_lea.vmem %s3, %s205
        %s207 = smul.u32 2, %s16
        %v208 = vld [vmem:[#allocation2] sm:$0xff]
        %v209 = vld [vmem:[#allocation2 + $0x8] sm:$0xff]
        %v210 = vld [vmem:[#allocation2 + $0x10] sm:$0xff]
        %v211 = vld [vmem:[#allocation2 + $0x18] sm:$0xff]
        %v212 = vld [vmem:[#allocation2 + $0x20] sm:$0xff]
        %v213 = vld [vmem:[#allocation2 + $0x28] sm:$0xff]
        %v214 = vld [vmem:[#allocation2 + $0x30] sm:$0xff]
        %v215 = vld [vmem:[#allocation2 + $0x38] sm:$0xff]
        %v216 = vld [vmem:[#allocation2 + $0x40] sm:$0xff]
        %v217 = vld [vmem:[#allocation2 + $0x48] sm:$0xff]
        %v218 = vld [vmem:[#allocation2 + $0x50] sm:$0xff]
        %v219 = vld [vmem:[#allocation2 + $0x58] sm:$0xff]
        %v220 = vld [vmem:[#allocation2 + $0x60] sm:$0xff]
        %v221 = vld [vmem:[#allocation2 + $0x68] sm:$0xff]
        %v222 = vld [vmem:[#allocation2 + $0x70] sm:$0xff]
        %v223 = vld [vmem:[#allocation2 + $0x78] sm:$0xff]
        %v224 = vld [vmem:[#allocation2 + $0x80] sm:$0xff]
        %v225 = vld [vmem:[#allocation2 + $0x88] sm:$0xff]
        %v226 = vld [vmem:[#allocation2 + $0x90] sm:$0xff]
        %v227 = vld [vmem:[#allocation2 + $0x98] sm:$0xff]
        %v228 = vld [vmem:[#allocation2 + $0xa0] sm:$0xff]
        %v229 = vld [vmem:[#allocation2 + $0xa8] sm:$0xff]
        %v230 = vld [vmem:[#allocation2 + $0xb0] sm:$0xff]
        %v231 = vld [vmem:[#allocation2 + $0xb8] sm:$0xff]
        %v232 = vld [vmem:[#allocation2 + $0xc0] sm:$0xff]
        %v233 = vld [vmem:[#allocation2 + $0xc8] sm:$0xff]
        %v234 = vld [vmem:[#allocation2 + $0xd0] sm:$0xff]
        %v235 = vld [vmem:[#allocation2 + $0xd8] sm:$0xff]
        %v236 = vld [vmem:[#allocation2 + $0xe0] sm:$0xff]
        %v237 = vld [vmem:[#allocation2 + $0xe8] sm:$0xff]
        %v238 = vld [vmem:[#allocation2 + $0xf0] sm:$0xff]
        %v239 = vld [vmem:[#allocation2 + $0xf8] sm:$0xff]
        %v240 = vld [vmem:[#allocation2 + $0x100] sm:$0xff]
        %v241 = vld [vmem:[#allocation2 + $0x108] sm:$0xff]
        %v242 = vld [vmem:[#allocation2 + $0x110] sm:$0xff]
        %v243 = vld [vmem:[#allocation2 + $0x118] sm:$0xff]
        %v244 = vld [vmem:[#allocation2 + $0x120] sm:$0xff]
        %v245 = vld [vmem:[#allocation2 + $0x128] sm:$0xff]
        %v246 = vld [vmem:[#allocation2 + $0x130] sm:$0xff]
        %v247 = vld [vmem:[#allocation2 + $0x138] sm:$0xff]
        %v248 = vld [vmem:[#allocation2 + $0x140] sm:$0xff]
        %v249 = vld [vmem:[#allocation2 + $0x148] sm:$0xff]
        %v250 = vld [vmem:[#allocation2 + $0x150] sm:$0xff]
        %v251 = vld [vmem:[#allocation2 + $0x158] sm:$0xff]
        %v252 = vld [vmem:[#allocation2 + $0x160] sm:$0xff]
        %v253 = vld [vmem:[#allocation2 + $0x168] sm:$0xff]
        %v254 = vld [vmem:[#allocation2 + $0x170] sm:$0xff]
        %v255 = vld [vmem:[#allocation2 + $0x178] sm:$0xff]
        %v256 = vld [vmem:[#allocation2 + $0x180] sm:$0xff]
        %v257 = vld [vmem:[#allocation2 + $0x188] sm:$0xff]
        %v258 = vld [vmem:[#allocation2 + $0x190] sm:$0xff]
        %v259 = vld [vmem:[#allocation2 + $0x198] sm:$0xff]
        %v260 = vld [vmem:[#allocation2 + $0x1a0] sm:$0xff]
        %v261 = vld [vmem:[#allocation2 + $0x1a8] sm:$0xff]
        %v262 = vld [vmem:[#allocation2 + $0x1b0] sm:$0xff]
        %v263 = vld [vmem:[#allocation2 + $0x1b8] sm:$0xff]
        %v264 = vld [vmem:[#allocation2 + $0x1c0] sm:$0xff]
        %v265 = vld [vmem:[#allocation2 + $0x1c8] sm:$0xff]
        %v266 = vld [vmem:[#allocation2 + $0x1d0] sm:$0xff]
        %v267 = vld [vmem:[#allocation2 + $0x1d8] sm:$0xff]
        %v268 = vld [vmem:[#allocation2 + $0x1e0] sm:$0xff]
        %v269 = vld [vmem:[#allocation2 + $0x1e8] sm:$0xff]
        %v270 = vld [vmem:[#allocation2 + $0x1f0] sm:$0xff]
        %v271 = vld [vmem:[#allocation2 + $0x1f8] sm:$0xff]
        %v272 = vld [vmem:[#allocation2 + $0x200] sm:$0xff]
        %v273 = vld [vmem:[#allocation2 + $0x208] sm:$0xff]
        %v274 = vld [vmem:[#allocation2 + $0x210] sm:$0xff]
        %v275 = vld [vmem:[#allocation2 + $0x218] sm:$0xff]
        %v276 = vld [vmem:[#allocation2 + $0x220] sm:$0xff]
        %v277 = vld [vmem:[#allocation2 + $0x228] sm:$0xff]
        %v278 = vld [vmem:[#allocation2 + $0x230] sm:$0xff]
        %v279 = vld [vmem:[#allocation2 + $0x238] sm:$0xff]
        %v280 = vld [vmem:[#allocation2 + $0x240] sm:$0xff]
        %v281 = vld [vmem:[#allocation2 + $0x248] sm:$0xff]
        %v282 = vld [vmem:[#allocation2 + $0x250] sm:$0xff]
        %v283 = vld [vmem:[#allocation2 + $0x258] sm:$0xff]
        %v284 = vld [vmem:[#allocation2 + $0x260] sm:$0xff]
        %v285 = vld [vmem:[#allocation2 + $0x268] sm:$0xff]
        %v286 = vld [vmem:[#allocation2 + $0x270] sm:$0xff]
        %v287 = vld [vmem:[#allocation2 + $0x278] sm:$0xff]
        %v288 = vld [vmem:[#allocation2 + $0x280] sm:$0xff]
        %v289 = vld [vmem:[#allocation2 + $0x288] sm:$0xff]
        %v290 = vld [vmem:[#allocation2 + $0x290] sm:$0xff]
        %v291 = vld [vmem:[#allocation2 + $0x298] sm:$0xff]
        %v292 = vld [vmem:[#allocation2 + $0x2a0] sm:$0xff]
        %v293 = vld [vmem:[#allocation2 + $0x2a8] sm:$0xff]
        %v294 = vld [vmem:[#allocation2 + $0x2b0] sm:$0xff]
        %v295 = vld [vmem:[#allocation2 + $0x2b8] sm:$0xff]
        %v296 = vld [vmem:[#allocation2 + $0x2c0] sm:$0xff]
        %v297 = vld [vmem:[#allocation2 + $0x2c8] sm:$0xff]
        %v298 = vld [vmem:[#allocation2 + $0x2d0] sm:$0xff]
        %v299 = vld [vmem:[#allocation2 + $0x2d8] sm:$0xff]
        %v300 = vld [vmem:[#allocation2 + $0x2e0] sm:$0xff]
        %v301 = vld [vmem:[#allocation2 + $0x2e8] sm:$0xff]
        %v302 = vld [vmem:[#allocation2 + $0x2f0] sm:$0xff]
        %v303 = vld [vmem:[#allocation2 + $0x2f8] sm:$0xff]
        %v304 = vld [vmem:[#allocation2 + $0x300] sm:$0xff]
        %v305 = vld [vmem:[#allocation2 + $0x308] sm:$0xff]
        %v306 = vld [vmem:[#allocation2 + $0x310] sm:$0xff]
        %v307 = vld [vmem:[#allocation2 + $0x318] sm:$0xff]
        %v308 = vld [vmem:[#allocation2 + $0x320] sm:$0xff]
        %v309 = vld [vmem:[#allocation2 + $0x328] sm:$0xff]
        %v310 = vld [vmem:[#allocation2 + $0x330] sm:$0xff]
        %v311 = vld [vmem:[#allocation2 + $0x338] sm:$0xff]
        %v312 = vld [vmem:[#allocation2 + $0x340] sm:$0xff]
        %v313 = vld [vmem:[#allocation2 + $0x348] sm:$0xff]
        %v314 = vld [vmem:[#allocation2 + $0x350] sm:$0xff]
        %v315 = vld [vmem:[#allocation2 + $0x358] sm:$0xff]
        %v316 = vld [vmem:[#allocation2 + $0x360] sm:$0xff]
        %v317 = vld [vmem:[#allocation2 + $0x368] sm:$0xff]
        %v318 = vld [vmem:[#allocation2 + $0x370] sm:$0xff]
        %v319 = vld [vmem:[#allocation2 + $0x378] sm:$0xff]
        %v320 = vld [vmem:[#allocation2 + $0x380] sm:$0xff]
        %v321 = vld [vmem:[#allocation2 + $0x388] sm:$0xff]
        %v322 = vld [vmem:[#allocation2 + $0x390] sm:$0xff]
        %v323 = vld [vmem:[#allocation2 + $0x398] sm:$0xff]
        %v324 = vld [vmem:[#allocation2 + $0x3a0] sm:$0xff]
        %v325 = vld [vmem:[#allocation2 + $0x3a8] sm:$0xff]
        %v326 = vld [vmem:[#allocation2 + $0x3b0] sm:$0xff]
        %v327 = vld [vmem:[#allocation2 + $0x3b8] sm:$0xff]
        %v328 = vld [vmem:[#allocation2 + $0x3c0] sm:$0xff]
        %v329 = vld [vmem:[#allocation2 + $0x3c8] sm:$0xff]
        %v330 = vld [vmem:[#allocation2 + $0x3d0] sm:$0xff]
        %v331 = vld [vmem:[#allocation2 + $0x3d8] sm:$0xff]
        %v332 = vld [vmem:[#allocation2 + $0x3e0] sm:$0xff]
        %v333 = vld [vmem:[#allocation2 + $0x3e8] sm:$0xff]
        %v334 = vld [vmem:[#allocation2 + $0x3f0] sm:$0xff]
        %v335 = vld [vmem:[#allocation2 + $0x3f8] sm:$0xff]
        %v336 = vld [vmem:[#allocation2 + $0x400] sm:$0xff]
        %v337 = vld [vmem:[#allocation2 + $0x408] sm:$0xff]
        %v338 = vld [vmem:[#allocation2 + $0x410] sm:$0xff]
        %v339 = vld [vmem:[#allocation2 + $0x418] sm:$0xff]
        %v340 = vld [vmem:[#allocation2 + $0x420] sm:$0xff]
        %v341 = vld [vmem:[#allocation2 + $0x428] sm:$0xff]
        %v342 = vld [vmem:[#allocation2 + $0x430] sm:$0xff]
        %v343 = vld [vmem:[#allocation2 + $0x438] sm:$0xff]
        %v344 = vld [vmem:[#allocation2 + $0x440] sm:$0xff]
        %v345 = vld [vmem:[#allocation2 + $0x448] sm:$0xff]
        %v346 = vld [vmem:[#allocation2 + $0x450] sm:$0xff]
        %v347 = vld [vmem:[#allocation2 + $0x458] sm:$0xff]
        %v348 = vld [vmem:[#allocation2 + $0x460] sm:$0xff]
        %v349 = vld [vmem:[#allocation2 + $0x468] sm:$0xff]
        %v350 = vld [vmem:[#allocation2 + $0x470] sm:$0xff]
        %v351 = vld [vmem:[#allocation2 + $0x478] sm:$0xff]
        %v352 = vld [vmem:[#allocation2 + $0x480] sm:$0xff]
        %v353 = vld [vmem:[#allocation2 + $0x488] sm:$0xff]
        %v354 = vld [vmem:[#allocation2 + $0x490] sm:$0xff]
        %v355 = vld [vmem:[#allocation2 + $0x498] sm:$0xff]
        %v356 = vld [vmem:[#allocation2 + $0x4a0] sm:$0xff]
        %v357 = vld [vmem:[#allocation2 + $0x4a8] sm:$0xff]
        %v358 = vld [vmem:[#allocation2 + $0x4b0] sm:$0xff]
        %v359 = vld [vmem:[#allocation2 + $0x4b8] sm:$0xff]
        %v360 = vld [vmem:[#allocation2 + $0x4c0] sm:$0xff]
        %v361 = vld [vmem:[#allocation2 + $0x4c8] sm:$0xff]
        %v362 = vld [vmem:[#allocation2 + $0x4d0] sm:$0xff]
        %v363 = vld [vmem:[#allocation2 + $0x4d8] sm:$0xff]
        %v364 = vld [vmem:[#allocation2 + $0x4e0] sm:$0xff]
        %v365 = vld [vmem:[#allocation2 + $0x4e8] sm:$0xff]
        %v366 = vld [vmem:[#allocation2 + $0x4f0] sm:$0xff]
        %v367 = vld [vmem:[#allocation2 + $0x4f8] sm:$0xff]
        %v368 = vld [vmem:[#allocation2 + $0x500] sm:$0xff]
        %v369 = vld [vmem:[#allocation2 + $0x508] sm:$0xff]
        %v370 = vld [vmem:[#allocation2 + $0x510] sm:$0xff]
        %v371 = vld [vmem:[#allocation2 + $0x518] sm:$0xff]
        %v372 = vld [vmem:[#allocation2 + $0x520] sm:$0xff]
        %v373 = vld [vmem:[#allocation2 + $0x528] sm:$0xff]
        %v374 = vld [vmem:[#allocation2 + $0x530] sm:$0xff]
        %v375 = vld [vmem:[#allocation2 + $0x538] sm:$0xff]
        %v376 = vld [vmem:[#allocation2 + $0x540] sm:$0xff]
        %v377 = vld [vmem:[#allocation2 + $0x548] sm:$0xff]
        %v378 = vld [vmem:[#allocation2 + $0x550] sm:$0xff]
        %v379 = vld [vmem:[#allocation2 + $0x558] sm:$0xff]
        %v380 = vld [vmem:[#allocation2 + $0x560] sm:$0xff]
        %v381 = vld [vmem:[#allocation2 + $0x568] sm:$0xff]
        %v382 = vld [vmem:[#allocation2 + $0x570] sm:$0xff]
        %v383 = vld [vmem:[#allocation2 + $0x578] sm:$0xff]
        %v384 = vld [vmem:[#allocation2 + $0x580] sm:$0xff]
        %v385 = vld [vmem:[#allocation2 + $0x588] sm:$0xff]
        %v386 = vld [vmem:[#allocation2 + $0x590] sm:$0xff]
        %v387 = vld [vmem:[#allocation2 + $0x598] sm:$0xff]
        %v388 = vld [vmem:[#allocation2 + $0x5a0] sm:$0xff]
        %v389 = vld [vmem:[#allocation2 + $0x5a8] sm:$0xff]
        %v390 = vld [vmem:[#allocation2 + $0x5b0] sm:$0xff]
        %v391 = vld [vmem:[#allocation2 + $0x5b8] sm:$0xff]
        %v392 = vld [vmem:[#allocation2 + $0x5c0] sm:$0xff]
        %v393 = vld [vmem:[#allocation2 + $0x5c8] sm:$0xff]
        %v394 = vld [vmem:[#allocation2 + $0x5d0] sm:$0xff]
        %v395 = vld [vmem:[#allocation2 + $0x5d8] sm:$0xff]
        %v396 = vld [vmem:[#allocation2 + $0x5e0] sm:$0xff]
        %v397 = vld [vmem:[#allocation2 + $0x5e8] sm:$0xff]
        %v398 = vld [vmem:[#allocation2 + $0x5f0] sm:$0xff]
        %v399 = vld [vmem:[#allocation2 + $0x5f8] sm:$0xff]
        %v400 = vld [vmem:[#allocation2 + $0x600] sm:$0xff]
        %v401 = vld [vmem:[#allocation2 + $0x608] sm:$0xff]
        %v402 = vld [vmem:[#allocation2 + $0x610] sm:$0xff]
        %v403 = vld [vmem:[#allocation2 + $0x618] sm:$0xff]
        %v404 = vld [vmem:[#allocation2 + $0x620] sm:$0xff]
        %v405 = vld [vmem:[#allocation2 + $0x628] sm:$0xff]
        %v406 = vld [vmem:[#allocation2 + $0x630] sm:$0xff]
        %v407 = vld [vmem:[#allocation2 + $0x638] sm:$0xff]
        %v408 = vld [vmem:[#allocation2 + $0x640] sm:$0xff]
        %v409 = vld [vmem:[#allocation2 + $0x648] sm:$0xff]
        %v410 = vld [vmem:[#allocation2 + $0x650] sm:$0xff]
        %v411 = vld [vmem:[#allocation2 + $0x658] sm:$0xff]
        %v412 = vld [vmem:[#allocation2 + $0x660] sm:$0xff]
        %v413 = vld [vmem:[#allocation2 + $0x668] sm:$0xff]
        %v414 = vld [vmem:[#allocation2 + $0x670] sm:$0xff]
        %v415 = vld [vmem:[#allocation2 + $0x678] sm:$0xff]
        %v416 = vld [vmem:[#allocation2 + $0x680] sm:$0xff]
        %v417 = vld [vmem:[#allocation2 + $0x688] sm:$0xff]
        %v418 = vld [vmem:[#allocation2 + $0x690] sm:$0xff]
        %v419 = vld [vmem:[#allocation2 + $0x698] sm:$0xff]
        %v420 = vld [vmem:[#allocation2 + $0x6a0] sm:$0xff]
        %v421 = vld [vmem:[#allocation2 + $0x6a8] sm:$0xff]
        %v422 = vld [vmem:[#allocation2 + $0x6b0] sm:$0xff]
        %v423 = vld [vmem:[#allocation2 + $0x6b8] sm:$0xff]
        %v424 = vld [vmem:[#allocation2 + $0x6c0] sm:$0xff]
        %v425 = vld [vmem:[#allocation2 + $0x6c8] sm:$0xff]
        %v426 = vld [vmem:[#allocation2 + $0x6d0] sm:$0xff]
        %v427 = vld [vmem:[#allocation2 + $0x6d8] sm:$0xff]
        %v428 = vld [vmem:[#allocation2 + $0x6e0] sm:$0xff]
        %v429 = vld [vmem:[#allocation2 + $0x6e8] sm:$0xff]
        %v430 = vld [vmem:[#allocation2 + $0x6f0] sm:$0xff]
        %v431 = vld [vmem:[#allocation2 + $0x6f8] sm:$0xff]
        %v432 = vld [vmem:[#allocation2 + $0x700] sm:$0xff]
        %v433 = vld [vmem:[#allocation2 + $0x708] sm:$0xff]
        %v434 = vld [vmem:[#allocation2 + $0x710] sm:$0xff]
        %v435 = vld [vmem:[#allocation2 + $0x718] sm:$0xff]
        %v436 = vld [vmem:[#allocation2 + $0x720] sm:$0xff]
        %v437 = vld [vmem:[#allocation2 + $0x728] sm:$0xff]
        %v438 = vld [vmem:[#allocation2 + $0x730] sm:$0xff]
        %v439 = vld [vmem:[#allocation2 + $0x738] sm:$0xff]
        %v440 = vld [vmem:[#allocation2 + $0x740] sm:$0xff]
        %v441 = vld [vmem:[#allocation2 + $0x748] sm:$0xff]
        %v442 = vld [vmem:[#allocation2 + $0x750] sm:$0xff]
        %v443 = vld [vmem:[#allocation2 + $0x758] sm:$0xff]
        %v444 = vld [vmem:[#allocation2 + $0x760] sm:$0xff]
        %v445 = vld [vmem:[#allocation2 + $0x768] sm:$0xff]
        %v446 = vld [vmem:[#allocation2 + $0x770] sm:$0xff]
        %v447 = vld [vmem:[#allocation2 + $0x778] sm:$0xff]
        %v448 = vld [vmem:[#allocation2 + $0x780] sm:$0xff]
        %v449 = vld [vmem:[#allocation2 + $0x788] sm:$0xff]
        %v450 = vld [vmem:[#allocation2 + $0x790] sm:$0xff]
        %v451 = vld [vmem:[#allocation2 + $0x798] sm:$0xff]
        %v452 = vld [vmem:[#allocation2 + $0x7a0] sm:$0xff]
        %v453 = vld [vmem:[#allocation2 + $0x7a8] sm:$0xff]
        %v454 = vld [vmem:[#allocation2 + $0x7b0] sm:$0xff]
        %v455 = vld [vmem:[#allocation2 + $0x7b8] sm:$0xff]
        %v456 = vld [vmem:[#allocation2 + $0x7c0] sm:$0xff]
        %v457 = vld [vmem:[#allocation2 + $0x7c8] sm:$0xff]
        %v458 = vld [vmem:[#allocation2 + $0x7d0] sm:$0xff]
        %v459 = vld [vmem:[#allocation2 + $0x7d8] sm:$0xff]
        %v460 = vld [vmem:[#allocation2 + $0x7e0] sm:$0xff]
        %v461 = vld [vmem:[#allocation2 + $0x7e8] sm:$0xff]
        %v462 = vld [vmem:[#allocation2 + $0x7f0] sm:$0xff]
        %v463 = vld [vmem:[#allocation2 + $0x7f8] sm:$0xff]
        %v464 = vld [vmem:[%s199] ss:$4 sm:$0x3]
        %s465 = scalar_lea.vmem %s199, 8
        %v466 = vld [vmem:[%s465] ss:$4 sm:$0x3]
        %s467 = sld [smem:[#allocation5]]
        %v468 = vstv %s467
        %v469 = vmul.f32 %v464, %v468
        %v470 = vmul.f32 %v466, %v468
        %s471 = scalar_lea.vmem %s199, 1
        %v472 = vld [vmem:[%s471] ss:$4 sm:$0x3]
        %s473 = scalar_lea.vmem %s199, 9
        %v474 = vld [vmem:[%s473] ss:$4 sm:$0x3]
        %s475 = sld [smem:[#allocation5 + $0x1]]
        %v476 = vstv %s475
        %v477 = vmul.f32 %v472, %v476
        %v478 = vmul.f32 %v474, %v476
        %v479 = vadd.f32 %v469, %v477
        %v480 = vadd.f32 %v470, %v478
        %s481 = scalar_lea.vmem %s199, 2
        %v482 = vld [vmem:[%s481] ss:$4 sm:$0x3]
        %s483 = scalar_lea.vmem %s199, 10
        %v484 = vld [vmem:[%s483] ss:$4 sm:$0x3]
        %s485 = sld [smem:[#allocation5 + $0x2]]
        %v486 = vstv %s485
        %v487 = vmul.f32 %v482, %v486
        %v488 = vmul.f32 %v484, %v486
        %v489 = vadd.f32 %v479, %v487
        %v490 = vadd.f32 %v480, %v488
        %v493 = vcombine.low %v489, %v490
        %v495 = vunpack.c.l.s4 1966171168
        %v496 = vunpack.c.0.s8 %v495
        %v497 = vlaneseq
        %v498 = vshrl.u32 %v497, 7
        %v499 = vsub.s32 %v496, %v498
        %v500 = vrot.slane %v493, %v499
        %v501 = vcombine.high %v500, %v500
        %v503 = vunpack.c.l.s4 1966171168
        %v504 = vunpack.c.0.s8 %v503
        %v505 = vlaneseq
        %v506 = vshrl.u32 %v505, 7
        %v507 = vsub.s32 %v504, %v506
        %v508 = vrot.slane %v500, %v507
        %v510 = vunpack.c.l.s4 1966171168
        %v511 = vunpack.c.0.s8 %v510
        %v512 = vlaneseq
        %v513 = vshrl.u32 %v512, 7
        %v514 = vsub.s32 %v511, %v513
        %v515 = vrot.slane %v501, %v514
        %518 = vmatprep.subr.mxu0 %v209
        %519 = vmatpush1.msra.mxu0 %v208
        %520 = vmatprep.subr.mxu0 %v217
        %521 = vmatpush1.msra.mxu0 %v216
        %522 = vmatprep.subr.mxu0 %v225
        %523 = vmatpush1.msra.mxu0 %v224
        %524 = vmatprep.subr.mxu0 %v233
        %525 = vmatpush1.msra.mxu0 %v232
        %526 = vmatprep.subr.mxu0 %v241
        %527 = vmatpush1.msra.mxu0 %v240
        %528 = vmatprep.subr.mxu0 %v249
        %529 = vmatpush1.msra.mxu0 %v248
        %530 = vmatprep.subr.mxu0 %v257
        %531 = vmatpush1.msra.mxu0 %v256
        %532 = vmatprep.subr.mxu0 %v265
        %533 = vmatpush1.msra.mxu0 %v264
        %534 = vmatprep.subr.mxu0 %v273
        %535 = vmatpush1.msra.mxu0 %v272
        %536 = vmatprep.subr.mxu0 %v281
        %537 = vmatpush1.msra.mxu0 %v280
        %538 = vmatprep.subr.mxu0 %v289
        %539 = vmatpush1.msra.mxu0 %v288
        %540 = vmatprep.subr.mxu0 %v297
        %541 = vmatpush1.msra.mxu0 %v296
        %542 = vmatprep.subr.mxu0 %v305
        %543 = vmatpush1.msra.mxu0 %v304
        %544 = vmatprep.subr.mxu0 %v313
        %545 = vmatpush1.msra.mxu0 %v312
        %546 = vmatprep.subr.mxu0 %v321
        %547 = vmatpush1.msra.mxu0 %v320
        %548 = vmatprep.subr.mxu0 %v329
        %549 = vmatpush1.msra.mxu0 %v328
        %550 = vmatprep.subr.mxu0 %v337
        %551 = vmatpush1.msra.mxu0 %v336
        %552 = vmatprep.subr.mxu0 %v345
        %553 = vmatpush1.msra.mxu0 %v344
        %554 = vmatprep.subr.mxu0 %v353
        %555 = vmatpush1.msra.mxu0 %v352
        %556 = vmatprep.subr.mxu0 %v361
        %557 = vmatpush1.msra.mxu0 %v360
        %558 = vmatprep.subr.mxu0 %v369
        %559 = vmatpush1.msra.mxu0 %v368
        %560 = vmatprep.subr.mxu0 %v377
        %561 = vmatpush1.msra.mxu0 %v376
        %562 = vmatprep.subr.mxu0 %v385
        %563 = vmatpush1.msra.mxu0 %v384
        %564 = vmatprep.subr.mxu0 %v393
        %565 = vmatpush1.msra.mxu0 %v392
        %566 = vmatprep.subr.mxu0 %v401
        %567 = vmatpush1.msra.mxu0 %v400
        %568 = vmatprep.subr.mxu0 %v409
        %569 = vmatpush1.msra.mxu0 %v408
        %570 = vmatprep.subr.mxu0 %v417
        %571 = vmatpush1.msra.mxu0 %v416
        %572 = vmatprep.subr.mxu0 %v425
        %573 = vmatpush1.msra.mxu0 %v424
        %574 = vmatprep.subr.mxu0 %v433
        %575 = vmatpush1.msra.mxu0 %v432
        %576 = vmatprep.subr.mxu0 %v441
        %577 = vmatpush1.msra.mxu0 %v440
        %578 = vmatprep.subr.mxu0 %v449
        %579 = vmatpush1.msra.mxu0 %v448
        %580 = vmatprep.subr.mxu0 %v457
        %581 = vmatpush1.msra.mxu0 %v456
        %582 = vmatprep.mubr.f32.mxu0 %v515
        %583 = vmatmul.mubr.f32.gmra.mrb[0].mxu0 %v508
        %v584 = vpop.f32.mrb[0].mxu0
        %v585 = vadd.f32 0.0, %v584
        %v586 = vpop.f32.mrb[0].mxu0
        %v587 = vadd.f32 0.0, %v586
        %588 = vdwg.mxu0
        %589 = vmatprep.subr.mxu0 %v211
        %590 = vmatpush1.msra.mxu0 %v210
        %591 = vmatprep.subr.mxu0 %v219
        %592 = vmatpush1.msra.mxu0 %v218
        %593 = vmatprep.subr.mxu0 %v227
        %594 = vmatpush1.msra.mxu0 %v226
        %595 = vmatprep.subr.mxu0 %v235
        %596 = vmatpush1.msra.mxu0 %v234
        %597 = vmatprep.subr.mxu0 %v243
        %598 = vmatpush1.msra.mxu0 %v242
        %599 = vmatprep.subr.mxu0 %v251
        %600 = vmatpush1.msra.mxu0 %v250
        %601 = vmatprep.subr.mxu0 %v259
        %602 = vmatpush1.msra.mxu0 %v258
        %603 = vmatprep.subr.mxu0 %v267
        %604 = vmatpush1.msra.mxu0 %v266
        %605 = vmatprep.subr.mxu0 %v275
        %606 = vmatpush1.msra.mxu0 %v274
        %607 = vmatprep.subr.mxu0 %v283
        %608 = vmatpush1.msra.mxu0 %v282
        %609 = vmatprep.subr.mxu0 %v291
        %610 = vmatpush1.msra.mxu0 %v290
        %611 = vmatprep.subr.mxu0 %v299
        %612 = vmatpush1.msra.mxu0 %v298
        %613 = vmatprep.subr.mxu0 %v307
        %614 = vmatpush1.msra.mxu0 %v306
        %615 = vmatprep.subr.mxu0 %v315
        %616 = vmatpush1.msra.mxu0 %v314
        %617 = vmatprep.subr.mxu0 %v323
        %618 = vmatpush1.msra.mxu0 %v322
        %619 = vmatprep.subr.mxu0 %v331
        %620 = vmatpush1.msra.mxu0 %v330
        %621 = vmatprep.subr.mxu0 %v339
        %622 = vmatpush1.msra.mxu0 %v338
        %623 = vmatprep.subr.mxu0 %v347
        %624 = vmatpush1.msra.mxu0 %v346
        %625 = vmatprep.subr.mxu0 %v355
        %626 = vmatpush1.msra.mxu0 %v354
        %627 = vmatprep.subr.mxu0 %v363
        %628 = vmatpush1.msra.mxu0 %v362
        %629 = vmatprep.subr.mxu0 %v371
        %630 = vmatpush1.msra.mxu0 %v370
        %631 = vmatprep.subr.mxu0 %v379
        %632 = vmatpush1.msra.mxu0 %v378
        %633 = vmatprep.subr.mxu0 %v387
        %634 = vmatpush1.msra.mxu0 %v386
        %635 = vmatprep.subr.mxu0 %v395
        %636 = vmatpush1.msra.mxu0 %v394
        %637 = vmatprep.subr.mxu0 %v403
        %638 = vmatpush1.msra.mxu0 %v402
        %639 = vmatprep.subr.mxu0 %v411
        %640 = vmatpush1.msra.mxu0 %v410
        %641 = vmatprep.subr.mxu0 %v419
        %642 = vmatpush1.msra.mxu0 %v418
        %643 = vmatprep.subr.mxu0 %v427
        %644 = vmatpush1.msra.mxu0 %v426
        %645 = vmatprep.subr.mxu0 %v435
        %646 = vmatpush1.msra.mxu0 %v434
        %647 = vmatprep.subr.mxu0 %v443
        %648 = vmatpush1.msra.mxu0 %v442
        %649 = vmatprep.subr.mxu0 %v451
        %650 = vmatpush1.msra.mxu0 %v450
        %651 = vmatprep.subr.mxu0 %v459
        %652 = vmatpush1.msra.mxu0 %v458
        %653 = vmatprep.mubr.f32.mxu0 %v515
        %654 = vmatmul.mubr.f32.gmra.mrb[0].mxu0 %v508
        %v655 = vpop.f32.mrb[0].mxu0
        %v656 = vadd.f32 0.0, %v655
        %v657 = vpop.f32.mrb[0].mxu0
        %v658 = vadd.f32 0.0, %v657
        %659 = vdwg.mxu0
        %660 = vmatprep.subr.mxu0 %v213
        %661 = vmatpush1.msra.mxu0 %v212
        %662 = vmatprep.subr.mxu0 %v221
        %663 = vmatpush1.msra.mxu0 %v220
        %664 = vmatprep.subr.mxu0 %v229
        %665 = vmatpush1.msra.mxu0 %v228
        %666 = vmatprep.subr.mxu0 %v237
        %667 = vmatpush1.msra.mxu0 %v236
        %668 = vmatprep.subr.mxu0 %v245
        %669 = vmatpush1.msra.mxu0 %v244
        %670 = vmatprep.subr.mxu0 %v253
        %671 = vmatpush1.msra.mxu0 %v252
        %672 = vmatprep.subr.mxu0 %v261
        %673 = vmatpush1.msra.mxu0 %v260
        %674 = vmatprep.subr.mxu0 %v269
        %675 = vmatpush1.msra.mxu0 %v268
        %676 = vmatprep.subr.mxu0 %v277
        %677 = vmatpush1.msra.mxu0 %v276
        %678 = vmatprep.subr.mxu0 %v285
        %679 = vmatpush1.msra.mxu0 %v284
        %680 = vmatprep.subr.mxu0 %v293
        %681 = vmatpush1.msra.mxu0 %v292
        %682 = vmatprep.subr.mxu0 %v301
        %683 = vmatpush1.msra.mxu0 %v300
        %684 = vmatprep.subr.mxu0 %v309
        %685 = vmatpush1.msra.mxu0 %v308
        %686 = vmatprep.subr.mxu0 %v317
        %687 = vmatpush1.msra.mxu0 %v316
        %688 = vmatprep.subr.mxu0 %v325
        %689 = vmatpush1.msra.mxu0 %v324
        %690 = vmatprep.subr.mxu0 %v333
        %691 = vmatpush1.msra.mxu0 %v332
        %692 = vmatprep.subr.mxu0 %v341
        %693 = vmatpush1.msra.mxu0 %v340
        %694 = vmatprep.subr.mxu0 %v349
        %695 = vmatpush1.msra.mxu0 %v348
        %696 = vmatprep.subr.mxu0 %v357
        %697 = vmatpush1.msra.mxu0 %v356
        %698 = vmatprep.subr.mxu0 %v365
        %699 = vmatpush1.msra.mxu0 %v364
        %700 = vmatprep.subr.mxu0 %v373
        %701 = vmatpush1.msra.mxu0 %v372
        %702 = vmatprep.subr.mxu0 %v381
        %703 = vmatpush1.msra.mxu0 %v380
        %704 = vmatprep.subr.mxu0 %v389
        %705 = vmatpush1.msra.mxu0 %v388
        %706 = vmatprep.subr.mxu0 %v397
        %707 = vmatpush1.msra.mxu0 %v396
        %708 = vmatprep.subr.mxu0 %v405
        %709 = vmatpush1.msra.mxu0 %v404
        %710 = vmatprep.subr.mxu0 %v413
        %711 = vmatpush1.msra.mxu0 %v412
        %712 = vmatprep.subr.mxu0 %v421
        %713 = vmatpush1.msra.mxu0 %v420
        %714 = vmatprep.subr.mxu0 %v429
        %715 = vmatpush1.msra.mxu0 %v428
        %716 = vmatprep.subr.mxu0 %v437
        %717 = vmatpush1.msra.mxu0 %v436
        %718 = vmatprep.subr.mxu0 %v445
        %719 = vmatpush1.msra.mxu0 %v444
        %720 = vmatprep.subr.mxu0 %v453
        %721 = vmatpush1.msra.mxu0 %v452
        %722 = vmatprep.subr.mxu0 %v461
        %723 = vmatpush1.msra.mxu0 %v460
        %724 = vmatprep.mubr.f32.mxu0 %v515
        %725 = vmatmul.mubr.f32.gmra.mrb[0].mxu0 %v508
        %v726 = vpop.f32.mrb[0].mxu0
        %v727 = vadd.f32 0.0, %v726
        %v728 = vpop.f32.mrb[0].mxu0
        %v729 = vadd.f32 0.0, %v728
        %730 = vdwg.mxu0
        %731 = vmatprep.subr.mxu0 %v215
        %732 = vmatpush1.msra.mxu0 %v214
        %733 = vmatprep.subr.mxu0 %v223
        %734 = vmatpush1.msra.mxu0 %v222
        %735 = vmatprep.subr.mxu0 %v231
        %736 = vmatpush1.msra.mxu0 %v230
        %737 = vmatprep.subr.mxu0 %v239
        %738 = vmatpush1.msra.mxu0 %v238
        %739 = vmatprep.subr.mxu0 %v247
        %740 = vmatpush1.msra.mxu0 %v246
        %741 = vmatprep.subr.mxu0 %v255
        %742 = vmatpush1.msra.mxu0 %v254
        %743 = vmatprep.subr.mxu0 %v263
        %744 = vmatpush1.msra.mxu0 %v262
        %745 = vmatprep.subr.mxu0 %v271
        %746 = vmatpush1.msra.mxu0 %v270
        %747 = vmatprep.subr.mxu0 %v279
        %748 = vmatpush1.msra.mxu0 %v278
        %749 = vmatprep.subr.mxu0 %v287
        %750 = vmatpush1.msra.mxu0 %v286
        %751 = vmatprep.subr.mxu0 %v295
        %752 = vmatpush1.msra.mxu0 %v294
        %753 = vmatprep.subr.mxu0 %v303
        %754 = vmatpush1.msra.mxu0 %v302
        %755 = vmatprep.subr.mxu0 %v311
        %756 = vmatpush1.msra.mxu0 %v310
        %757 = vmatprep.subr.mxu0 %v319
        %758 = vmatpush1.msra.mxu0 %v318
        %759 = vmatprep.subr.mxu0 %v327
        %760 = vmatpush1.msra.mxu0 %v326
        %761 = vmatprep.subr.mxu0 %v335
        %762 = vmatpush1.msra.mxu0 %v334
        %763 = vmatprep.subr.mxu0 %v343
        %764 = vmatpush1.msra.mxu0 %v342
        %765 = vmatprep.subr.mxu0 %v351
        %766 = vmatpush1.msra.mxu0 %v350
        %767 = vmatprep.subr.mxu0 %v359
        %768 = vmatpush1.msra.mxu0 %v358
        %769 = vmatprep.subr.mxu0 %v367
        %770 = vmatpush1.msra.mxu0 %v366
        %771 = vmatprep.subr.mxu0 %v375
        %772 = vmatpush1.msra.mxu0 %v374
        %773 = vmatprep.subr.mxu0 %v383
        %774 = vmatpush1.msra.mxu0 %v382
        %775 = vmatprep.subr.mxu0 %v391
        %776 = vmatpush1.msra.mxu0 %v390
        %777 = vmatprep.subr.mxu0 %v399
        %778 = vmatpush1.msra.mxu0 %v398
        %779 = vmatprep.subr.mxu0 %v407
        %780 = vmatpush1.msra.mxu0 %v406
        %781 = vmatprep.subr.mxu0 %v415
        %782 = vmatpush1.msra.mxu0 %v414
        %783 = vmatprep.subr.mxu0 %v423
        %784 = vmatpush1.msra.mxu0 %v422
        %785 = vmatprep.subr.mxu0 %v431
        %786 = vmatpush1.msra.mxu0 %v430
        %787 = vmatprep.subr.mxu0 %v439
        %788 = vmatpush1.msra.mxu0 %v438
        %789 = vmatprep.subr.mxu0 %v447
        %790 = vmatpush1.msra.mxu0 %v446
        %791 = vmatprep.subr.mxu0 %v455
        %792 = vmatpush1.msra.mxu0 %v454
        %793 = vmatprep.subr.mxu0 %v463
        %794 = vmatpush1.msra.mxu0 %v462
        %795 = vmatprep.mubr.f32.mxu0 %v515
        %796 = vmatmul.mubr.f32.gmra.mrb[0].mxu0 %v508
        %v797 = vpop.f32.mrb[0].mxu0
        %v798 = vadd.f32 0.0, %v797
        %v799 = vpop.f32.mrb[0].mxu0
        %v800 = vadd.f32 0.0, %v799
        %801 = vdwg.mxu0
        %v810 = vcombine.low %v585, %v587
        %v811 = vcombine.low %v656, %v658
        %v812 = vcombine.low %v727, %v729
        %v813 = vcombine.low %v798, %v800
        %v815 = vunpack.c.l.s4 1966171168
        %v816 = vunpack.c.0.s8 %v815
        %v817 = vlaneseq
        %v818 = vshrl.u32 %v817, 7
        %v819 = vsub.s32 %v816, %v818
        %v820 = vrot.slane %v810, %v819
        %v822 = vunpack.c.l.s4 1966171168
        %v823 = vunpack.c.0.s8 %v822
        %v824 = vlaneseq
        %v825 = vshrl.u32 %v824, 7
        %v826 = vsub.s32 %v823, %v825
        %v827 = vrot.slane %v811, %v826
        %v829 = vunpack.c.l.s4 1966171168
        %v830 = vunpack.c.0.s8 %v829
        %v831 = vlaneseq
        %v832 = vshrl.u32 %v831, 7
        %v833 = vsub.s32 %v830, %v832
        %v834 = vrot.slane %v812, %v833
        %v836 = vunpack.c.l.s4 1966171168
        %v837 = vunpack.c.0.s8 %v836
        %v838 = vlaneseq
        %v839 = vshrl.u32 %v838, 7
        %v840 = vsub.s32 %v837, %v839
        %v841 = vrot.slane %v813, %v840
        %v842 = vcombine.low %v820, %v827
        %v843 = vcombine.high %v820, %v827
        %v844 = vcombine.low %v834, %v841
        %v845 = vcombine.high %v834, %v841
        %v847 = vunpack.c.l.s4 1966171168
        %v848 = vunpack.c.0.s8 %v847
        %v849 = vlaneseq
        %v850 = vshrl.u32 %v849, 7
        %v851 = vsub.s32 %v848, %v850
        %v852 = vrot.slane %v842, %v851
        %v854 = vunpack.c.l.s4 1966171168
        %v855 = vunpack.c.0.s8 %v854
        %v856 = vlaneseq
        %v857 = vshrl.u32 %v856, 7
        %v858 = vsub.s32 %v855, %v857
        %v859 = vrot.slane %v843, %v858
        %v861 = vunpack.c.l.s4 1966171168
        %v862 = vunpack.c.0.s8 %v861
        %v863 = vlaneseq
        %v864 = vshrl.u32 %v863, 7
        %v865 = vsub.s32 %v862, %v864
        %v866 = vrot.slane %v844, %v865
        %v868 = vunpack.c.l.s4 1966171168
        %v869 = vunpack.c.0.s8 %v868
        %v870 = vlaneseq
        %v871 = vshrl.u32 %v870, 7
        %v872 = vsub.s32 %v869, %v871
        %v873 = vrot.slane %v845, %v872
        %v874 = vcombine.low %v852, %v866
        %v875 = vcombine.low %v859, %v873
        %878 = vst [vmem:[%s206] ss:$4 sm:$0xff] %v874
        %s879 = scalar_lea.vmem %s206, 32
        %880 = vst [vmem:[%s879] ss:$4 sm:$0xff] %v875
        %v881 = vld [vmem:[%s199] ss:$4 sm:$0x3]
        %v882 = vld [vmem:[%s465] ss:$4 sm:$0x3]
        %s883 = sld [smem:[#allocation5 + $0x80]]
        %v884 = vstv %s883
        %v885 = vmul.f32 %v881, %v884
        %v886 = vmul.f32 %v882, %v884
        %v887 = vld [vmem:[%s471] ss:$4 sm:$0x3]
        %v888 = vld [vmem:[%s473] ss:$4 sm:$0x3]
        %s889 = sld [smem:[#allocation5 + $0x81]]
        %v890 = vstv %s889
        %v891 = vmul.f32 %v887, %v890
        %v892 = vmul.f32 %v888, %v890
        %v893 = vadd.f32 %v885, %v891
        %v894 = vadd.f32 %v886, %v892
        %v895 = vld [vmem:[%s481] ss:$4 sm:$0x3]
        %v896 = vld [vmem:[%s483] ss:$4 sm:$0x3]
        %s897 = sld [smem:[#allocation5 + $0x82]]
        %v898 = vstv %s897
        %v899 = vmul.f32 %v895, %v898
        %v900 = vmul.f32 %v896, %v898
        %v901 = vadd.f32 %v893, %v899
        %v902 = vadd.f32 %v894, %v900
        %v905 = vcombine.low %v901, %v902
        %v907 = vunpack.c.l.s4 1966171168
        %v908 = vunpack.c.0.s8 %v907
        %v909 = vlaneseq
        %v910 = vshrl.u32 %v909, 7
        %v911 = vsub.s32 %v908, %v910
        %v912 = vrot.slane %v905, %v911
        %v913 = vcombine.high %v912, %v912
        %v915 = vunpack.c.l.s4 1966171168
        %v916 = vunpack.c.0.s8 %v915
        %v917 = vlaneseq
        %v918 = vshrl.u32 %v917, 7
        %v919 = vsub.s32 %v916, %v918
        %v920 = vrot.slane %v912, %v919
        %v922 = vunpack.c.l.s4 1966171168
        %v923 = vunpack.c.0.s8 %v922
        %v924 = vlaneseq
        %v925 = vshrl.u32 %v924, 7
        %v926 = vsub.s32 %v923, %v925
        %v927 = vrot.slane %v913, %v926
        %930 = vmatprep.subr.mxu0 %v209
        %931 = vmatpush1.msra.mxu0 %v208
        %932 = vmatprep.subr.mxu0 %v217
        %933 = vmatpush1.msra.mxu0 %v216
        %934 = vmatprep.subr.mxu0 %v225
        %935 = vmatpush1.msra.mxu0 %v224
        %936 = vmatprep.subr.mxu0 %v233
        %937 = vmatpush1.msra.mxu0 %v232
        %938 = vmatprep.subr.mxu0 %v241
        %939 = vmatpush1.msra.mxu0 %v240
        %940 = vmatprep.subr.mxu0 %v249
        %941 = vmatpush1.msra.mxu0 %v248
        %942 = vmatprep.subr.mxu0 %v257
        %943 = vmatpush1.msra.mxu0 %v256
        %944 = vmatprep.subr.mxu0 %v265
        %945 = vmatpush1.msra.mxu0 %v264
        %946 = vmatprep.subr.mxu0 %v273
        %947 = vmatpush1.msra.mxu0 %v272
        %948 = vmatprep.subr.mxu0 %v281
        %949 = vmatpush1.msra.mxu0 %v280
        %950 = vmatprep.subr.mxu0 %v289
        %951 = vmatpush1.msra.mxu0 %v288
        %952 = vmatprep.subr.mxu0 %v297
        %953 = vmatpush1.msra.mxu0 %v296
        %954 = vmatprep.subr.mxu0 %v305
        %955 = vmatpush1.msra.mxu0 %v304
        %956 = vmatprep.subr.mxu0 %v313
        %957 = vmatpush1.msra.mxu0 %v312
        %958 = vmatprep.subr.mxu0 %v321
        %959 = vmatpush1.msra.mxu0 %v320
        %960 = vmatprep.subr.mxu0 %v329
        %961 = vmatpush1.msra.mxu0 %v328
        %962 = vmatprep.subr.mxu0 %v337
        %963 = vmatpush1.msra.mxu0 %v336
        %964 = vmatprep.subr.mxu0 %v345
        %965 = vmatpush1.msra.mxu0 %v344
        %966 = vmatprep.subr.mxu0 %v353
        %967 = vmatpush1.msra.mxu0 %v352
        %968 = vmatprep.subr.mxu0 %v361
        %969 = vmatpush1.msra.mxu0 %v360
        %970 = vmatprep.subr.mxu0 %v369
        %971 = vmatpush1.msra.mxu0 %v368
        %972 = vmatprep.subr.mxu0 %v377
        %973 = vmatpush1.msra.mxu0 %v376
        %974 = vmatprep.subr.mxu0 %v385
        %975 = vmatpush1.msra.mxu0 %v384
        %976 = vmatprep.subr.mxu0 %v393
        %977 = vmatpush1.msra.mxu0 %v392
        %978 = vmatprep.subr.mxu0 %v401
        %979 = vmatpush1.msra.mxu0 %v400
        %980 = vmatprep.subr.mxu0 %v409
        %981 = vmatpush1.msra.mxu0 %v408
        %982 = vmatprep.subr.mxu0 %v417
        %983 = vmatpush1.msra.mxu0 %v416
        %984 = vmatprep.subr.mxu0 %v425
        %985 = vmatpush1.msra.mxu0 %v424
        %986 = vmatprep.subr.mxu0 %v433
        %987 = vmatpush1.msra.mxu0 %v432
        %988 = vmatprep.subr.mxu0 %v441
        %989 = vmatpush1.msra.mxu0 %v440
        %990 = vmatprep.subr.mxu0 %v449
        %991 = vmatpush1.msra.mxu0 %v448
        %992 = vmatprep.subr.mxu0 %v457
        %993 = vmatpush1.msra.mxu0 %v456
        %994 = vmatprep.mubr.f32.mxu0 %v927
        %995 = vmatmul.mubr.f32.gmra.mrb[0].mxu0 %v920
        %v996 = vpop.f32.mrb[0].mxu0
        %v997 = vadd.f32 0.0, %v996
        %v998 = vpop.f32.mrb[0].mxu0
        %v999 = vadd.f32 0.0, %v998
        %1000 = vdwg.mxu0
        %1001 = vmatprep.subr.mxu0 %v211
        %1002 = vmatpush1.msra.mxu0 %v210
        %1003 = vmatprep.subr.mxu0 %v219
        %1004 = vmatpush1.msra.mxu0 %v218
        %1005 = vmatprep.subr.mxu0 %v227
        %1006 = vmatpush1.msra.mxu0 %v226
        %1007 = vmatprep.subr.mxu0 %v235
        %1008 = vmatpush1.msra.mxu0 %v234
        %1009 = vmatprep.subr.mxu0 %v243
        %1010 = vmatpush1.msra.mxu0 %v242
        %1011 = vmatprep.subr.mxu0 %v251
        %1012 = vmatpush1.msra.mxu0 %v250
        %1013 = vmatprep.subr.mxu0 %v259
        %1014 = vmatpush1.msra.mxu0 %v258
        %1015 = vmatprep.subr.mxu0 %v267
        %1016 = vmatpush1.msra.mxu0 %v266
        %1017 = vmatprep.subr.mxu0 %v275
        %1018 = vmatpush1.msra.mxu0 %v274
        %1019 = vmatprep.subr.mxu0 %v283
        %1020 = vmatpush1.msra.mxu0 %v282
        %1021 = vmatprep.subr.mxu0 %v291
        %1022 = vmatpush1.msra.mxu0 %v290
        %1023 = vmatprep.subr.mxu0 %v299
        %1024 = vmatpush1.msra.mxu0 %v298
        %1025 = vmatprep.subr.mxu0 %v307
        %1026 = vmatpush1.msra.mxu0 %v306
        %1027 = vmatprep.subr.mxu0 %v315
        %1028 = vmatpush1.msra.mxu0 %v314
        %1029 = vmatprep.subr.mxu0 %v323
        %1030 = vmatpush1.msra.mxu0 %v322
        %1031 = vmatprep.subr.mxu0 %v331
        %1032 = vmatpush1.msra.mxu0 %v330
        %1033 = vmatprep.subr.mxu0 %v339
        %1034 = vmatpush1.msra.mxu0 %v338
        %1035 = vmatprep.subr.mxu0 %v347
        %1036 = vmatpush1.msra.mxu0 %v346
        %1037 = vmatprep.subr.mxu0 %v355
        %1038 = vmatpush1.msra.mxu0 %v354
        %1039 = vmatprep.subr.mxu0 %v363
        %1040 = vmatpush1.msra.mxu0 %v362
        %1041 = vmatprep.subr.mxu0 %v371
        %1042 = vmatpush1.msra.mxu0 %v370
        %1043 = vmatprep.subr.mxu0 %v379
        %1044 = vmatpush1.msra.mxu0 %v378
        %1045 = vmatprep.subr.mxu0 %v387
        %1046 = vmatpush1.msra.mxu0 %v386
        %1047 = vmatprep.subr.mxu0 %v395
        %1048 = vmatpush1.msra.mxu0 %v394
        %1049 = vmatprep.subr.mxu0 %v403
        %1050 = vmatpush1.msra.mxu0 %v402
        %1051 = vmatprep.subr.mxu0 %v411
        %1052 = vmatpush1.msra.mxu0 %v410
        %1053 = vmatprep.subr.mxu0 %v419
        %1054 = vmatpush1.msra.mxu0 %v418
        %1055 = vmatprep.subr.mxu0 %v427
        %1056 = vmatpush1.msra.mxu0 %v426
        %1057 = vmatprep.subr.mxu0 %v435
        %1058 = vmatpush1.msra.mxu0 %v434
        %1059 = vmatprep.subr.mxu0 %v443
        %1060 = vmatpush1.msra.mxu0 %v442
        %1061 = vmatprep.subr.mxu0 %v451
        %1062 = vmatpush1.msra.mxu0 %v450
        %1063 = vmatprep.subr.mxu0 %v459
        %1064 = vmatpush1.msra.mxu0 %v458
        %1065 = vmatprep.mubr.f32.mxu0 %v927
        %1066 = vmatmul.mubr.f32.gmra.mrb[0].mxu0 %v920
        %v1067 = vpop.f32.mrb[0].mxu0
        %v1068 = vadd.f32 0.0, %v1067
        %v1069 = vpop.f32.mrb[0].mxu0
        %v1070 = vadd.f32 0.0, %v1069
        %1071 = vdwg.mxu0
        %1072 = vmatprep.subr.mxu0 %v213
        %1073 = vmatpush1.msra.mxu0 %v212
        %1074 = vmatprep.subr.mxu0 %v221
        %1075 = vmatpush1.msra.mxu0 %v220
        %1076 = vmatprep.subr.mxu0 %v229
        %1077 = vmatpush1.msra.mxu0 %v228
        %1078 = vmatprep.subr.mxu0 %v237
        %1079 = vmatpush1.msra.mxu0 %v236
        %1080 = vmatprep.subr.mxu0 %v245
        %1081 = vmatpush1.msra.mxu0 %v244
        %1082 = vmatprep.subr.mxu0 %v253
        %1083 = vmatpush1.msra.mxu0 %v252
        %1084 = vmatprep.subr.mxu0 %v261
        %1085 = vmatpush1.msra.mxu0 %v260
        %1086 = vmatprep.subr.mxu0 %v269
        %1087 = vmatpush1.msra.mxu0 %v268
        %1088 = vmatprep.subr.mxu0 %v277
        %1089 = vmatpush1.msra.mxu0 %v276
        %1090 = vmatprep.subr.mxu0 %v285
        %1091 = vmatpush1.msra.mxu0 %v284
        %1092 = vmatprep.subr.mxu0 %v293
        %1093 = vmatpush1.msra.mxu0 %v292
        %1094 = vmatprep.subr.mxu0 %v301
        %1095 = vmatpush1.msra.mxu0 %v300
        %1096 = vmatprep.subr.mxu0 %v309
        %1097 = vmatpush1.msra.mxu0 %v308
        %1098 = vmatprep.subr.mxu0 %v317
        %1099 = vmatpush1.msra.mxu0 %v316
        %1100 = vmatprep.subr.mxu0 %v325
        %1101 = vmatpush1.msra.mxu0 %v324
        %1102 = vmatprep.subr.mxu0 %v333
        %1103 = vmatpush1.msra.mxu0 %v332
        %1104 = vmatprep.subr.mxu0 %v341
        %1105 = vmatpush1.msra.mxu0 %v340
        %1106 = vmatprep.subr.mxu0 %v349
        %1107 = vmatpush1.msra.mxu0 %v348
        %1108 = vmatprep.subr.mxu0 %v357
        %1109 = vmatpush1.msra.mxu0 %v356
        %1110 = vmatprep.subr.mxu0 %v365
        %1111 = vmatpush1.msra.mxu0 %v364
        %1112 = vmatprep.subr.mxu0 %v373
        %1113 = vmatpush1.msra.mxu0 %v372
        %1114 = vmatprep.subr.mxu0 %v381
        %1115 = vmatpush1.msra.mxu0 %v380
        %1116 = vmatprep.subr.mxu0 %v389
        %1117 = vmatpush1.msra.mxu0 %v388
        %1118 = vmatprep.subr.mxu0 %v397
        %1119 = vmatpush1.msra.mxu0 %v396
        %1120 = vmatprep.subr.mxu0 %v405
        %1121 = vmatpush1.msra.mxu0 %v404
        %1122 = vmatprep.subr.mxu0 %v413
        %1123 = vmatpush1.msra.mxu0 %v412
        %1124 = vmatprep.subr.mxu0 %v421
        %1125 = vmatpush1.msra.mxu0 %v420
        %1126 = vmatprep.subr.mxu0 %v429
        %1127 = vmatpush1.msra.mxu0 %v428
        %1128 = vmatprep.subr.mxu0 %v437
        %1129 = vmatpush1.msra.mxu0 %v436
        %1130 = vmatprep.subr.mxu0 %v445
        %1131 = vmatpush1.msra.mxu0 %v444
        %1132 = vmatprep.subr.mxu0 %v453
        %1133 = vmatpush1.msra.mxu0 %v452
        %1134 = vmatprep.subr.mxu0 %v461
        %1135 = vmatpush1.msra.mxu0 %v460
        %1136 = vmatprep.mubr.f32.mxu0 %v927
        %1137 = vmatmul.mubr.f32.gmra.mrb[0].mxu0 %v920
        %v1138 = vpop.f32.mrb[0].mxu0
        %v1139 = vadd.f32 0.0, %v1138
        %v1140 = vpop.f32.mrb[0].mxu0
        %v1141 = vadd.f32 0.0, %v1140
        %1142 = vdwg.mxu0
        %1143 = vmatprep.subr.mxu0 %v215
        %1144 = vmatpush1.msra.mxu0 %v214
        %1145 = vmatprep.subr.mxu0 %v223
        %1146 = vmatpush1.msra.mxu0 %v222
        %1147 = vmatprep.subr.mxu0 %v231
        %1148 = vmatpush1.msra.mxu0 %v230
        %1149 = vmatprep.subr.mxu0 %v239
        %1150 = vmatpush1.msra.mxu0 %v238
        %1151 = vmatprep.subr.mxu0 %v247
        %1152 = vmatpush1.msra.mxu0 %v246
        %1153 = vmatprep.subr.mxu0 %v255
        %1154 = vmatpush1.msra.mxu0 %v254
        %1155 = vmatprep.subr.mxu0 %v263
        %1156 = vmatpush1.msra.mxu0 %v262
        %1157 = vmatprep.subr.mxu0 %v271
        %1158 = vmatpush1.msra.mxu0 %v270
        %1159 = vmatprep.subr.mxu0 %v279
        %1160 = vmatpush1.msra.mxu0 %v278
        %1161 = vmatprep.subr.mxu0 %v287
        %1162 = vmatpush1.msra.mxu0 %v286
        %1163 = vmatprep.subr.mxu0 %v295
        %1164 = vmatpush1.msra.mxu0 %v294
        %1165 = vmatprep.subr.mxu0 %v303
        %1166 = vmatpush1.msra.mxu0 %v302
        %1167 = vmatprep.subr.mxu0 %v311
        %1168 = vmatpush1.msra.mxu0 %v310
        %1169 = vmatprep.subr.mxu0 %v319
        %1170 = vmatpush1.msra.mxu0 %v318
        %1171 = vmatprep.subr.mxu0 %v327
        %1172 = vmatpush1.msra.mxu0 %v326
        %1173 = vmatprep.subr.mxu0 %v335
        %1174 = vmatpush1.msra.mxu0 %v334
        %1175 = vmatprep.subr.mxu0 %v343
        %1176 = vmatpush1.msra.mxu0 %v342
        %1177 = vmatprep.subr.mxu0 %v351
        %1178 = vmatpush1.msra.mxu0 %v350
        %1179 = vmatprep.subr.mxu0 %v359
        %1180 = vmatpush1.msra.mxu0 %v358
        %1181 = vmatprep.subr.mxu0 %v367
        %1182 = vmatpush1.msra.mxu0 %v366
        %1183 = vmatprep.subr.mxu0 %v375
        %1184 = vmatpush1.msra.mxu0 %v374
        %1185 = vmatprep.subr.mxu0 %v383
        %1186 = vmatpush1.msra.mxu0 %v382
        %1187 = vmatprep.subr.mxu0 %v391
        %1188 = vmatpush1.msra.mxu0 %v390
        %1189 = vmatprep.subr.mxu0 %v399
        %1190 = vmatpush1.msra.mxu0 %v398
        %1191 = vmatprep.subr.mxu0 %v407
        %1192 = vmatpush1.msra.mxu0 %v406
        %1193 = vmatprep.subr.mxu0 %v415
        %1194 = vmatpush1.msra.mxu0 %v414
        %1195 = vmatprep.subr.mxu0 %v423
        %1196 = vmatpush1.msra.mxu0 %v422
        %1197 = vmatprep.subr.mxu0 %v431
        %1198 = vmatpush1.msra.mxu0 %v430
        %1199 = vmatprep.subr.mxu0 %v439
        %1200 = vmatpush1.msra.mxu0 %v438
        %1201 = vmatprep.subr.mxu0 %v447
        %1202 = vmatpush1.msra.mxu0 %v446
        %1203 = vmatprep.subr.mxu0 %v455
        %1204 = vmatpush1.msra.mxu0 %v454
        %1205 = vmatprep.subr.mxu0 %v463
        %1206 = vmatpush1.msra.mxu0 %v462
        %1207 = vmatprep.mubr.f32.mxu0 %v927
        %1208 = vmatmul.mubr.f32.gmra.mrb[0].mxu0 %v920
        %v1209 = vpop.f32.mrb[0].mxu0
        %v1210 = vadd.f32 0.0, %v1209
        %v1211 = vpop.f32.mrb[0].mxu0
        %v1212 = vadd.f32 0.0, %v1211
        %1213 = vdwg.mxu0
        %v1222 = vcombine.low %v997, %v999
        %v1223 = vcombine.low %v1068, %v1070
        %v1224 = vcombine.low %v1139, %v1141
        %v1225 = vcombine.low %v1210, %v1212
        %v1227 = vunpack.c.l.s4 1966171168
        %v1228 = vunpack.c.0.s8 %v1227
        %v1229 = vlaneseq
        %v1230 = vshrl.u32 %v1229, 7
        %v1231 = vsub.s32 %v1228, %v1230
        %v1232 = vrot.slane %v1222, %v1231
        %v1234 = vunpack.c.l.s4 1966171168
        %v1235 = vunpack.c.0.s8 %v1234
        %v1236 = vlaneseq
        %v1237 = vshrl.u32 %v1236, 7
        %v1238 = vsub.s32 %v1235, %v1237
        %v1239 = vrot.slane %v1223, %v1238
        %v1241 = vunpack.c.l.s4 1966171168
        %v1242 = vunpack.c.0.s8 %v1241
        %v1243 = vlaneseq
        %v1244 = vshrl.u32 %v1243, 7
        %v1245 = vsub.s32 %v1242, %v1244
        %v1246 = vrot.slane %v1224, %v1245
        %v1248 = vunpack.c.l.s4 1966171168
        %v1249 = vunpack.c.0.s8 %v1248
        %v1250 = vlaneseq
        %v1251 = vshrl.u32 %v1250, 7
        %v1252 = vsub.s32 %v1249, %v1251
        %v1253 = vrot.slane %v1225, %v1252
        %v1254 = vcombine.low %v1232, %v1239
        %v1255 = vcombine.high %v1232, %v1239
        %v1256 = vcombine.low %v1246, %v1253
        %v1257 = vcombine.high %v1246, %v1253
        %v1259 = vunpack.c.l.s4 1966171168
        %v1260 = vunpack.c.0.s8 %v1259
        %v1261 = vlaneseq
        %v1262 = vshrl.u32 %v1261, 7
        %v1263 = vsub.s32 %v1260, %v1262
        %v1264 = vrot.slane %v1254, %v1263
        %v1266 = vunpack.c.l.s4 1966171168
        %v1267 = vunpack.c.0.s8 %v1266
        %v1268 = vlaneseq
        %v1269 = vshrl.u32 %v1268, 7
        %v1270 = vsub.s32 %v1267, %v1269
        %v1271 = vrot.slane %v1255, %v1270
        %v1273 = vunpack.c.l.s4 1966171168
        %v1274 = vunpack.c.0.s8 %v1273
        %v1275 = vlaneseq
        %v1276 = vshrl.u32 %v1275, 7
        %v1277 = vsub.s32 %v1274, %v1276
        %v1278 = vrot.slane %v1256, %v1277
        %v1280 = vunpack.c.l.s4 1966171168
        %v1281 = vunpack.c.0.s8 %v1280
        %v1282 = vlaneseq
        %v1283 = vshrl.u32 %v1282, 7
        %v1284 = vsub.s32 %v1281, %v1283
        %v1285 = vrot.slane %v1257, %v1284
        %v1286 = vcombine.low %v1264, %v1278
        %v1287 = vcombine.low %v1271, %v1285
        %s1290 = scalar_lea.vmem %s206, 1
        %1291 = vst [vmem:[%s1290] ss:$4 sm:$0xff] %v1286
        %s1292 = scalar_lea.vmem %s206, 33
        %1293 = vst [vmem:[%s1292] ss:$4 sm:$0xff] %v1287
        %v1294 = vld [vmem:[%s199] ss:$4 sm:$0x3]
        %v1295 = vld [vmem:[%s465] ss:$4 sm:$0x3]
        %s1296 = sld [smem:[#allocation5 + $0x100]]
        %v1297 = vstv %s1296
        %v1298 = vmul.f32 %v1294, %v1297
        %v1299 = vmul.f32 %v1295, %v1297
        %v1300 = vld [vmem:[%s471] ss:$4 sm:$0x3]
        %v1301 = vld [vmem:[%s473] ss:$4 sm:$0x3]
        %s1302 = sld [smem:[#allocation5 + $0x101]]
        %v1303 = vstv %s1302
        %v1304 = vmul.f32 %v1300, %v1303
        %v1305 = vmul.f32 %v1301, %v1303
        %v1306 = vadd.f32 %v1298, %v1304
        %v1307 = vadd.f32 %v1299, %v1305
        %v1308 = vld [vmem:[%s481] ss:$4 sm:$0x3]
        %v1309 = vld [vmem:[%s483] ss:$4 sm:$0x3]
        %s1310 = sld [smem:[#allocation5 + $0x102]]
        %v1311 = vstv %s1310
        %v1312 = vmul.f32 %v1308, %v1311
        %v1313 = vmul.f32 %v1309, %v1311
        %v1314 = vadd.f32 %v1306, %v1312
        %v1315 = vadd.f32 %v1307, %v1313
        %v1318 = vcombine.low %v1314, %v1315
        %v1320 = vunpack.c.l.s4 1966171168
        %v1321 = vunpack.c.0.s8 %v1320
        %v1322 = vlaneseq
        %v1323 = vshrl.u32 %v1322, 7
        %v1324 = vsub.s32 %v1321, %v1323
        %v1325 = vrot.slane %v1318, %v1324
        %v1326 = vcombine.high %v1325, %v1325
        %v1328 = vunpack.c.l.s4 1966171168
        %v1329 = vunpack.c.0.s8 %v1328
        %v1330 = vlaneseq
        %v1331 = vshrl.u32 %v1330, 7
        %v1332 = vsub.s32 %v1329, %v1331
        %v1333 = vrot.slane %v1325, %v1332
        %v1335 = vunpack.c.l.s4 1966171168
        %v1336 = vunpack.c.0.s8 %v1335
        %v1337 = vlaneseq
        %v1338 = vshrl.u32 %v1337, 7
        %v1339 = vsub.s32 %v1336, %v1338
        %v1340 = vrot.slane %v1326, %v1339
        %1343 = vmatprep.subr.mxu0 %v209
        %1344 = vmatpush1.msra.mxu0 %v208
        %1345 = vmatprep.subr.mxu0 %v217
        %1346 = vmatpush1.msra.mxu0 %v216
        %1347 = vmatprep.subr.mxu0 %v225
        %1348 = vmatpush1.msra.mxu0 %v224
        %1349 = vmatprep.subr.mxu0 %v233
        %1350 = vmatpush1.msra.mxu0 %v232
        %1351 = vmatprep.subr.mxu0 %v241
        %1352 = vmatpush1.msra.mxu0 %v240
        %1353 = vmatprep.subr.mxu0 %v249
        %1354 = vmatpush1.msra.mxu0 %v248
        %1355 = vmatprep.subr.mxu0 %v257
        %1356 = vmatpush1.msra.mxu0 %v256
        %1357 = vmatprep.subr.mxu0 %v265
        %1358 = vmatpush1.msra.mxu0 %v264
        %1359 = vmatprep.subr.mxu0 %v273
        %1360 = vmatpush1.msra.mxu0 %v272
        %1361 = vmatprep.subr.mxu0 %v281
        %1362 = vmatpush1.msra.mxu0 %v280
        %1363 = vmatprep.subr.mxu0 %v289
        %1364 = vmatpush1.msra.mxu0 %v288
        %1365 = vmatprep.subr.mxu0 %v297
        %1366 = vmatpush1.msra.mxu0 %v296
        %1367 = vmatprep.subr.mxu0 %v305
        %1368 = vmatpush1.msra.mxu0 %v304
        %1369 = vmatprep.subr.mxu0 %v313
        %1370 = vmatpush1.msra.mxu0 %v312
        %1371 = vmatprep.subr.mxu0 %v321
        %1372 = vmatpush1.msra.mxu0 %v320
        %1373 = vmatprep.subr.mxu0 %v329
        %1374 = vmatpush1.msra.mxu0 %v328
        %1375 = vmatprep.subr.mxu0 %v337
        %1376 = vmatpush1.msra.mxu0 %v336
        %1377 = vmatprep.subr.mxu0 %v345
        %1378 = vmatpush1.msra.mxu0 %v344
        %1379 = vmatprep.subr.mxu0 %v353
        %1380 = vmatpush1.msra.mxu0 %v352
        %1381 = vmatprep.subr.mxu0 %v361
        %1382 = vmatpush1.msra.mxu0 %v360
        %1383 = vmatprep.subr.mxu0 %v369
        %1384 = vmatpush1.msra.mxu0 %v368
        %1385 = vmatprep.subr.mxu0 %v377
        %1386 = vmatpush1.msra.mxu0 %v376
        %1387 = vmatprep.subr.mxu0 %v385
        %1388 = vmatpush1.msra.mxu0 %v384
        %1389 = vmatprep.subr.mxu0 %v393
        %1390 = vmatpush1.msra.mxu0 %v392
        %1391 = vmatprep.subr.mxu0 %v401
        %1392 = vmatpush1.msra.mxu0 %v400
        %1393 = vmatprep.subr.mxu0 %v409
        %1394 = vmatpush1.msra.mxu0 %v408
        %1395 = vmatprep.subr.mxu0 %v417
        %1396 = vmatpush1.msra.mxu0 %v416
        %1397 = vmatprep.subr.mxu0 %v425
        %1398 = vmatpush1.msra.mxu0 %v424
        %1399 = vmatprep.subr.mxu0 %v433
        %1400 = vmatpush1.msra.mxu0 %v432
        %1401 = vmatprep.subr.mxu0 %v441
        %1402 = vmatpush1.msra.mxu0 %v440
        %1403 = vmatprep.subr.mxu0 %v449
        %1404 = vmatpush1.msra.mxu0 %v448
        %1405 = vmatprep.subr.mxu0 %v457
        %1406 = vmatpush1.msra.mxu0 %v456
        %1407 = vmatprep.mubr.f32.mxu0 %v1340
        %1408 = vmatmul.mubr.f32.gmra.mrb[0].mxu0 %v1333
        %v1409 = vpop.f32.mrb[0].mxu0
        %v1410 = vadd.f32 0.0, %v1409
        %v1411 = vpop.f32.mrb[0].mxu0
        %v1412 = vadd.f32 0.0, %v1411
        %1413 = vdwg.mxu0
        %1414 = vmatprep.subr.mxu0 %v211
        %1415 = vmatpush1.msra.mxu0 %v210
        %1416 = vmatprep.subr.mxu0 %v219
        %1417 = vmatpush1.msra.mxu0 %v218
        %1418 = vmatprep.subr.mxu0 %v227
        %1419 = vmatpush1.msra.mxu0 %v226
        %1420 = vmatprep.subr.mxu0 %v235
        %1421 = vmatpush1.msra.mxu0 %v234
        %1422 = vmatprep.subr.mxu0 %v243
        %1423 = vmatpush1.msra.mxu0 %v242
        %1424 = vmatprep.subr.mxu0 %v251
        %1425 = vmatpush1.msra.mxu0 %v250
        %1426 = vmatprep.subr.mxu0 %v259
        %1427 = vmatpush1.msra.mxu0 %v258
        %1428 = vmatprep.subr.mxu0 %v267
        %1429 = vmatpush1.msra.mxu0 %v266
        %1430 = vmatprep.subr.mxu0 %v275
        %1431 = vmatpush1.msra.mxu0 %v274
        %1432 = vmatprep.subr.mxu0 %v283
        %1433 = vmatpush1.msra.mxu0 %v282
        %1434 = vmatprep.subr.mxu0 %v291
        %1435 = vmatpush1.msra.mxu0 %v290
        %1436 = vmatprep.subr.mxu0 %v299
        %1437 = vmatpush1.msra.mxu0 %v298
        %1438 = vmatprep.subr.mxu0 %v307
        %1439 = vmatpush1.msra.mxu0 %v306
        %1440 = vmatprep.subr.mxu0 %v315
        %1441 = vmatpush1.msra.mxu0 %v314
        %1442 = vmatprep.subr.mxu0 %v323
        %1443 = vmatpush1.msra.mxu0 %v322
        %1444 = vmatprep.subr.mxu0 %v331
        %1445 = vmatpush1.msra.mxu0 %v330
        %1446 = vmatprep.subr.mxu0 %v339
        %1447 = vmatpush1.msra.mxu0 %v338
        %1448 = vmatprep.subr.mxu0 %v347
        %1449 = vmatpush1.msra.mxu0 %v346
        %1450 = vmatprep.subr.mxu0 %v355
        %1451 = vmatpush1.msra.mxu0 %v354
        %1452 = vmatprep.subr.mxu0 %v363
        %1453 = vmatpush1.msra.mxu0 %v362
        %1454 = vmatprep.subr.mxu0 %v371
        %1455 = vmatpush1.msra.mxu0 %v370
        %1456 = vmatprep.subr.mxu0 %v379
        %1457 = vmatpush1.msra.mxu0 %v378
        %1458 = vmatprep.subr.mxu0 %v387
        %1459 = vmatpush1.msra.mxu0 %v386
        %1460 = vmatprep.subr.mxu0 %v395
        %1461 = vmatpush1.msra.mxu0 %v394
        %1462 = vmatprep.subr.mxu0 %v403
        %1463 = vmatpush1.msra.mxu0 %v402
        %1464 = vmatprep.subr.mxu0 %v411
        %1465 = vmatpush1.msra.mxu0 %v410
        %1466 = vmatprep.subr.mxu0 %v419
        %1467 = vmatpush1.msra.mxu0 %v418
        %1468 = vmatprep.subr.mxu0 %v427
        %1469 = vmatpush1.msra.mxu0 %v426
        %1470 = vmatprep.subr.mxu0 %v435
        %1471 = vmatpush1.msra.mxu0 %v434
        %1472 = vmatprep.subr.mxu0 %v443
        %1473 = vmatpush1.msra.mxu0 %v442
        %1474 = vmatprep.subr.mxu0 %v451
        %1475 = vmatpush1.msra.mxu0 %v450
        %1476 = vmatprep.subr.mxu0 %v459
        %1477 = vmatpush1.msra.mxu0 %v458
        %1478 = vmatprep.mubr.f32.mxu0 %v1340
        %1479 = vmatmul.mubr.f32.gmra.mrb[0].mxu0 %v1333
        %v1480 = vpop.f32.mrb[0].mxu0
        %v1481 = vadd.f32 0.0, %v1480
        %v1482 = vpop.f32.mrb[0].mxu0
        %v1483 = vadd.f32 0.0, %v1482
        %1484 = vdwg.mxu0
        %1485 = vmatprep.subr.mxu0 %v213
        %1486 = vmatpush1.msra.mxu0 %v212
        %1487 = vmatprep.subr.mxu0 %v221
        %1488 = vmatpush1.msra.mxu0 %v220
        %1489 = vmatprep.subr.mxu0 %v229
        %1490 = vmatpush1.msra.mxu0 %v228
        %1491 = vmatprep.subr.mxu0 %v237
        %1492 = vmatpush1.msra.mxu0 %v236
        %1493 = vmatprep.subr.mxu0 %v245
        %1494 = vmatpush1.msra.mxu0 %v244
        %1495 = vmatprep.subr.mxu0 %v253
        %1496 = vmatpush1.msra.mxu0 %v252
        %1497 = vmatprep.subr.mxu0 %v261
        %1498 = vmatpush1.msra.mxu0 %v260
        %1499 = vmatprep.subr.mxu0 %v269
        %1500 = vmatpush1.msra.mxu0 %v268
        %1501 = vmatprep.subr.mxu0 %v277
        %1502 = vmatpush1.msra.mxu0 %v276
        %1503 = vmatprep.subr.mxu0 %v285
        %1504 = vmatpush1.msra.mxu0 %v284
        %1505 = vmatprep.subr.mxu0 %v293
        %1506 = vmatpush1.msra.mxu0 %v292
        %1507 = vmatprep.subr.mxu0 %v301
        %1508 = vmatpush1.msra.mxu0 %v300
        %1509 = vmatprep.subr.mxu0 %v309
        %1510 = vmatpush1.msra.mxu0 %v308
        %1511 = vmatprep.subr.mxu0 %v317
        %1512 = vmatpush1.msra.mxu0 %v316
        %1513 = vmatprep.subr.mxu0 %v325
        %1514 = vmatpush1.msra.mxu0 %v324
        %1515 = vmatprep.subr.mxu0 %v333
        %1516 = vmatpush1.msra.mxu0 %v332
        %1517 = vmatprep.subr.mxu0 %v341
        %1518 = vmatpush1.msra.mxu0 %v340
        %1519 = vmatprep.subr.mxu0 %v349
        %1520 = vmatpush1.msra.mxu0 %v348
        %1521 = vmatprep.subr.mxu0 %v357
        %1522 = vmatpush1.msra.mxu0 %v356
        %1523 = vmatprep.subr.mxu0 %v365
        %1524 = vmatpush1.msra.mxu0 %v364
        %1525 = vmatprep.subr.mxu0 %v373
        %1526 = vmatpush1.msra.mxu0 %v372
        %1527 = vmatprep.subr.mxu0 %v381
        %1528 = vmatpush1.msra.mxu0 %v380
        %1529 = vmatprep.subr.mxu0 %v389
        %1530 = vmatpush1.msra.mxu0 %v388
        %1531 = vmatprep.subr.mxu0 %v397
        %1532 = vmatpush1.msra.mxu0 %v396
        %1533 = vmatprep.subr.mxu0 %v405
        %1534 = vmatpush1.msra.mxu0 %v404
        %1535 = vmatprep.subr.mxu0 %v413
        %1536 = vmatpush1.msra.mxu0 %v412
        %1537 = vmatprep.subr.mxu0 %v421
        %1538 = vmatpush1.msra.mxu0 %v420
        %1539 = vmatprep.subr.mxu0 %v429
        %1540 = vmatpush1.msra.mxu0 %v428
        %1541 = vmatprep.subr.mxu0 %v437
        %1542 = vmatpush1.msra.mxu0 %v436
        %1543 = vmatprep.subr.mxu0 %v445
        %1544 = vmatpush1.msra.mxu0 %v444
        %1545 = vmatprep.subr.mxu0 %v453
        %1546 = vmatpush1.msra.mxu0 %v452
        %1547 = vmatprep.subr.mxu0 %v461
        %1548 = vmatpush1.msra.mxu0 %v460
        %1549 = vmatprep.mubr.f32.mxu0 %v1340
        %1550 = vmatmul.mubr.f32.gmra.mrb[0].mxu0 %v1333
        %v1551 = vpop.f32.mrb[0].mxu0
        %v1552 = vadd.f32 0.0, %v1551
        %v1553 = vpop.f32.mrb[0].mxu0
        %v1554 = vadd.f32 0.0, %v1553
        %1555 = vdwg.mxu0
        %1556 = vmatprep.subr.mxu0 %v215
        %1557 = vmatpush1.msra.mxu0 %v214
        %1558 = vmatprep.subr.mxu0 %v223
        %1559 = vmatpush1.msra.mxu0 %v222
        %1560 = vmatprep.subr.mxu0 %v231
        %1561 = vmatpush1.msra.mxu0 %v230
        %1562 = vmatprep.subr.mxu0 %v239
        %1563 = vmatpush1.msra.mxu0 %v238
        %1564 = vmatprep.subr.mxu0 %v247
        %1565 = vmatpush1.msra.mxu0 %v246
        %1566 = vmatprep.subr.mxu0 %v255
        %1567 = vmatpush1.msra.mxu0 %v254
        %1568 = vmatprep.subr.mxu0 %v263
        %1569 = vmatpush1.msra.mxu0 %v262
        %1570 = vmatprep.subr.mxu0 %v271
        %1571 = vmatpush1.msra.mxu0 %v270
        %1572 = vmatprep.subr.mxu0 %v279
        %1573 = vmatpush1.msra.mxu0 %v278
        %1574 = vmatprep.subr.mxu0 %v287
        %1575 = vmatpush1.msra.mxu0 %v286
        %1576 = vmatprep.subr.mxu0 %v295
        %1577 = vmatpush1.msra.mxu0 %v294
        %1578 = vmatprep.subr.mxu0 %v303
        %1579 = vmatpush1.msra.mxu0 %v302
        %1580 = vmatprep.subr.mxu0 %v311
        %1581 = vmatpush1.msra.mxu0 %v310
        %1582 = vmatprep.subr.mxu0 %v319
        %1583 = vmatpush1.msra.mxu0 %v318
        %1584 = vmatprep.subr.mxu0 %v327
        %1585 = vmatpush1.msra.mxu0 %v326
        %1586 = vmatprep.subr.mxu0 %v335
        %1587 = vmatpush1.msra.mxu0 %v334
        %1588 = vmatprep.subr.mxu0 %v343
        %1589 = vmatpush1.msra.mxu0 %v342
        %1590 = vmatprep.subr.mxu0 %v351
        %1591 = vmatpush1.msra.mxu0 %v350
        %1592 = vmatprep.subr.mxu0 %v359
        %1593 = vmatpush1.msra.mxu0 %v358
        %1594 = vmatprep.subr.mxu0 %v367
        %1595 = vmatpush1.msra.mxu0 %v366
        %1596 = vmatprep.subr.mxu0 %v375
        %1597 = vmatpush1.msra.mxu0 %v374
        %1598 = vmatprep.subr.mxu0 %v383
        %1599 = vmatpush1.msra.mxu0 %v382
        %1600 = vmatprep.subr.mxu0 %v391
        %1601 = vmatpush1.msra.mxu0 %v390
        %1602 = vmatprep.subr.mxu0 %v399
        %1603 = vmatpush1.msra.mxu0 %v398
        %1604 = vmatprep.subr.mxu0 %v407
        %1605 = vmatpush1.msra.mxu0 %v406
        %1606 = vmatprep.subr.mxu0 %v415
        %1607 = vmatpush1.msra.mxu0 %v414
        %1608 = vmatprep.subr.mxu0 %v423
        %1609 = vmatpush1.msra.mxu0 %v422
        %1610 = vmatprep.subr.mxu0 %v431
        %1611 = vmatpush1.msra.mxu0 %v430
        %1612 = vmatprep.subr.mxu0 %v439
        %1613 = vmatpush1.msra.mxu0 %v438
        %1614 = vmatprep.subr.mxu0 %v447
        %1615 = vmatpush1.msra.mxu0 %v446
        %1616 = vmatprep.subr.mxu0 %v455
        %1617 = vmatpush1.msra.mxu0 %v454
        %1618 = vmatprep.subr.mxu0 %v463
        %1619 = vmatpush1.msra.mxu0 %v462
        %1620 = vmatprep.mubr.f32.mxu0 %v1340
        %1621 = vmatmul.mubr.f32.gmra.mrb[0].mxu0 %v1333
        %v1622 = vpop.f32.mrb[0].mxu0
        %v1623 = vadd.f32 0.0, %v1622
        %v1624 = vpop.f32.mrb[0].mxu0
        %v1625 = vadd.f32 0.0, %v1624
        %1626 = vdwg.mxu0
        %v1635 = vcombine.low %v1410, %v1412
        %v1636 = vcombine.low %v1481, %v1483
        %v1637 = vcombine.low %v1552, %v1554
        %v1638 = vcombine.low %v1623, %v1625
        %v1640 = vunpack.c.l.s4 1966171168
        %v1641 = vunpack.c.0.s8 %v1640
        %v1642 = vlaneseq
        %v1643 = vshrl.u32 %v1642, 7
        %v1644 = vsub.s32 %v1641, %v1643
        %v1645 = vrot.slane %v1635, %v1644
        %v1647 = vunpack.c.l.s4 1966171168
        %v1648 = vunpack.c.0.s8 %v1647
        %v1649 = vlaneseq
        %v1650 = vshrl.u32 %v1649, 7
        %v1651 = vsub.s32 %v1648, %v1650
        %v1652 = vrot.slane %v1636, %v1651
        %v1654 = vunpack.c.l.s4 1966171168
        %v1655 = vunpack.c.0.s8 %v1654
        %v1656 = vlaneseq
        %v1657 = vshrl.u32 %v1656, 7
        %v1658 = vsub.s32 %v1655, %v1657
        %v1659 = vrot.slane %v1637, %v1658
        %v1661 = vunpack.c.l.s4 1966171168
        %v1662 = vunpack.c.0.s8 %v1661
        %v1663 = vlaneseq
        %v1664 = vshrl.u32 %v1663, 7
        %v1665 = vsub.s32 %v1662, %v1664
        %v1666 = vrot.slane %v1638, %v1665
        %v1667 = vcombine.low %v1645, %v1652
        %v1668 = vcombine.high %v1645, %v1652
        %v1669 = vcombine.low %v1659, %v1666
        %v1670 = vcombine.high %v1659, %v1666
        %v1672 = vunpack.c.l.s4 1966171168
        %v1673 = vunpack.c.0.s8 %v1672
        %v1674 = vlaneseq
        %v1675 = vshrl.u32 %v1674, 7
        %v1676 = vsub.s32 %v1673, %v1675
        %v1677 = vrot.slane %v1667, %v1676
        %v1679 = vunpack.c.l.s4 1966171168
        %v1680 = vunpack.c.0.s8 %v1679
        %v1681 = vlaneseq
        %v1682 = vshrl.u32 %v1681, 7
        %v1683 = vsub.s32 %v1680, %v1682
        %v1684 = vrot.slane %v1668, %v1683
        %v1686 = vunpack.c.l.s4 1966171168
        %v1687 = vunpack.c.0.s8 %v1686
        %v1688 = vlaneseq
        %v1689 = vshrl.u32 %v1688, 7
        %v1690 = vsub.s32 %v1687, %v1689
        %v1691 = vrot.slane %v1669, %v1690
        %v1693 = vunpack.c.l.s4 1966171168
        %v1694 = vunpack.c.0.s8 %v1693
        %v1695 = vlaneseq
        %v1696 = vshrl.u32 %v1695, 7
        %v1697 = vsub.s32 %v1694, %v1696
        %v1698 = vrot.slane %v1670, %v1697
        %v1699 = vcombine.low %v1677, %v1691
        %v1700 = vcombine.low %v1684, %v1698
        %s1703 = scalar_lea.vmem %s206, 2
        %1704 = vst [vmem:[%s1703] ss:$4 sm:$0xff] %v1699
        %s1705 = scalar_lea.vmem %s206, 34
        %1706 = vst [vmem:[%s1705] ss:$4 sm:$0xff] %v1700
        %s1707 = smul.u32 2, %s16
        %p1708 = scmp.lt.s32.totalorder %s1707, 3
        %s1709 = scalar_select %p1708, %s1707, 3
        %s1710 = smul.addr %s1709, 8
        %s1711 = smul.addr %s1710, 4
        %s1712 = scalar_lea.vmem %s3, %s1711
        // Predicated region
        $region41: #{tpu_custom_call.1} parent=31 // pred_check
          %p1713 = pneg %p102
        $region42: #{tpu_custom_call.1} parent=31 // pred_check_branch
          %1715 = sbr.rel (%p1713) target = $region44
        $region43: #{tpu_custom_call.1} parent=31 // pred_region
          %s1716 = smul.u32 2, %s16
        $region44: #{tpu_custom_call.1} parent=31 // pred_fallthru
          _
      $region32: #{tpu_custom_call.1} parent=5 // pred_fallthru
        _
      %p1717 = scmp.le.s32.totalorder 2, %s11
      // Predicated region
      $region45: #{tpu_custom_call.1} parent=5 // pred_check
        %p1718 = pneg %p1717
      $region46: #{tpu_custom_call.1} parent=5 // pred_check_branch
        %1720 = sbr.rel (%p1718) target = $region48
      $region47: #{tpu_custom_call.1} parent=5 // pred_region
        %s1721 = ssub.s32 %s11, 2
        // Predicated region
        $region49: #{tpu_custom_call.1} parent=47 // pred_check
          %p1722 = pneg %p108
        $region50: #{tpu_custom_call.1} parent=47 // pred_check_branch
          %1724 = sbr.rel (%p1722) target = $region52
        $region51: #{tpu_custom_call.1} parent=47 // pred_region
          %s1725 = smul.u32 2, %s17
          %p1726 = scmp.lt.s32.totalorder %s1725, 3
          %s1727 = scalar_select %p1726, %s1725, 3
          %s1728 = smul.addr %s1727, 8
          %s1729 = smul.addr %s1728, 4
          %s1730 = scalar_lea.vmem %s3, %s1729
        $region52: #{tpu_custom_call.1} parent=47 // pred_fallthru
          _
      $region48: #{tpu_custom_call.1} parent=5 // pred_fallthru
        _
    $region6: #{tpu_custom_call.1} parent=1 // loop_footer
      %s15 = sadd.s32 1, %s11
    $region7: #{tpu_custom_call.1} parent=1 // loop_footer_branch
      %10 = sbr.rel target = $region3
    $region8: #{tpu_custom_call.1} parent=1 // loop_exit
      _
    %1731 = vsyncpa [#allocation3], 1
    %s1732 = scalar_lea.sflag [#allocation3], 1
    %1733 = vsyncpa %s1732, 1
    %1734 = vsyncpa [#allocation4], 1
    %s1735 = scalar_lea.sflag [#allocation4], 1
    %1736 = vsyncpa %s1735, 1

</llo_original>
